<compile_context>
chip_gen: v7x
topology: tpu7x:2x2x1
jax: 0.10.0
libtpu: 0.0.40
codegen_flags: <defaults>
</compile_context>

<pallas_src>
import functools

import jax
import jax.numpy as jnp
from jax import lax
from jax.experimental import pallas as pl
from jax.experimental.pallas import tpu as pltpu

KSIZE = 7
PAD = (KSIZE - 1) // 2


# --------------------------------------------------------------------------
# Hardware / tiling helpers
# --------------------------------------------------------------------------
def _vmem_budget_bytes():
    """Usable VMEM budget: physical capacity minus ~15% Mosaic headroom."""
    cap = 64 << 20  # conservative fallback (v7x per-core VMEM)
    try:
        info = pltpu.get_tpu_info()
        for name in ("vmem_capacity_bytes", "vmem_size_bytes", "vmem_bytes"):
            v = getattr(info, name, None)
            if v:
                cap = int(v)
                break
    except Exception:
        pass
    return int(cap * 0.85)


def _sublane_pack(dtype):
    # Native sublane tile: 8 rows for 32-bit, 16 for bf16/fp16, 32 for 8-bit.
    return 32 // jnp.dtype(dtype).itemsize


def _pick_chunk(rows, pack):
    """Largest sublane-pack multiple (<= 4*pack) that divides `rows`."""
    for mult in (4, 2, 1):
        cand = pack * mult
        if rows > cand and rows % cand == 0:
            return cand
    return rows


# --------------------------------------------------------------------------
# In-kernel building blocks
# --------------------------------------------------------------------------
def _chunked_channel_sum(x_ref, c_chunk, HW):
    """Sum over the channel (sublane) axis of a (1, rows, HW) block, streamed
    in c_chunk-row slabs so no full-block f32 temp is ever materialized."""
    rows = x_ref.shape[1]
    num_chunks = rows // c_chunk
    if num_chunks <= 1:
        return jnp.sum(x_ref[0].astype(jnp.float32), axis=0, keepdims=True)

    def _csum(ci, acc):
        start = pl.multiple_of(ci * c_chunk, c_chunk)
        xc = x_ref[0, pl.ds(start, c_chunk), :].astype(jnp.float32)
        return acc + jnp.sum(xc, axis=0, keepdims=True)

    return lax.fori_loop(0, num_chunks, _csum,
                         jnp.zeros((1, HW), jnp.float32),
                         unroll=min(2, num_chunks))


def _conv_bn_sigmoid(sum_ref, w_ref, bn_ref, *, H, W, HWp, C):
    """7x7 zero-padded conv on the flattened channel mean + folded BN + sigmoid.

    sum_ref : (1, HWp) f32 VMEM scratch holding the channel *sum* in [:, :H*W].
    Returns the (1, HWp) f32 gate; only [:, :H*W] is meaningful.  The conv is
    14 XLU rolls + 49 scalar-weighted VPU mul-adds (weights live in SMEM).
    """
    HW = H * W
    del HW  # masks below are expressed directly in H, W
    mean_flat = sum_ref[...] * (1.0 / C)                        # (1, HWp) f32

    p_idx = lax.broadcasted_iota(jnp.int32, (1, HWp), 1)
    j_idx = p_idx % W                                           # column index

    # TODO(synk): for very large spatial maps (HWp >= ~32k) tile the conv over
    # lane chunks to bound vreg pressure (7 live f32 bases spill); second-order
    # since conv is O(HW) vs the gate's O(C*HW).
    bases = []
    for ky in range(KSIZE):
        dy = ky - PAD
        if dy == 0:
            rolled = mean_flat
        else:
            rolled = pltpu.roll(mean_flat, (-dy * W) % HWp, 1)
        rowmask = (p_idx >= (-dy) * W) & (p_idx < (H - dy) * W)
        bases.append(jnp.where(rowmask, rolled, 0.0))

    acc = jnp.zeros((1, HWp), jnp.float32)
    for kx in range(KSIZE):
        dx = kx - PAD
        s = bases[0] * w_ref[kx]
        for ky in range(1, KSIZE):
            s = s + bases[ky] * w_ref[ky * KSIZE + kx]
        if dx != 0:
            s = pltpu.roll(s, (-dx) % HWp, 1)
        colmask = (j_idx >= -dx) & (j_idx < (W - dx))
        acc = acc + jnp.where(colmask, s, 0.0)

    # Folded inference BatchNorm + sigmoid.
    # TODO(synk): training-mode BatchNorm (batch statistics / running-stat
    # updates) is not implemented; eval-mode BN only (folded scale+bias).
    return jax.nn.sigmoid(acc * bn_ref[0] + bn_ref[1])


def _gated_store(x_ref, o_ref, scale, c_chunk, HW):
    """o[0] = x[0] * scale, streamed per c_chunk with the broadcast hoisted
    out of the (unrolled) loop so broadcast_in_dim is not re-emitted per iter."""
    rows = x_ref.shape[1]
    num_chunks = rows // c_chunk
    if num_chunks <= 1:
        o_ref[0] = (x_ref[0] * scale).astype(o_ref.dtype)
        return

    scale_b = jnp.broadcast_to(scale, (c_chunk, HW))

    def _gate(ci, carry):
        start = pl.multiple_of(ci * c_chunk, c_chunk)
        xc = x_ref[0, pl.ds(start, c_chunk), :]
        o_ref[0, pl.ds(start, c_chunk), :] = (xc * scale_b).astype(o_ref.dtype)
        return carry

    lax.fori_loop(0, num_chunks, _gate, 0, unroll=min(4, num_chunks))


# --------------------------------------------------------------------------
# Kernels
# --------------------------------------------------------------------------
def _spatial_gate_block_kernel(w_ref, bn_ref, x_ref, o_ref, sum_ref, *,
                               H, W, HWp, c_chunk):
    """Path A: whole (C, HW) block per batch element."""
    C = x_ref.shape[1]
    HW = H * W

    ssum = _chunked_channel_sum(x_ref, c_chunk, HW)
    if HWp != HW:
        sum_ref[...] = jnp.zeros_like(sum_ref)       # clear lane-pad tail
    sum_ref[:, pl.ds(0, HW)] = ssum

    scale = _conv_bn_sigmoid(sum_ref, w_ref, bn_ref, H=H, W=W, HWp=HWp, C=C)
    scale = scale[:, :HW].astype(x_ref.dtype)        # (1, HW)

    _gated_store(x_ref, o_ref, scale, c_chunk, HW)


def _scale_pass_kernel(w_ref, bn_ref, x_ref, scale_ref, sum_ref, *,
                       H, W, HWp, C, c_chunk):
    """Path B pass 1: accumulate channel sum over C tiles; finalize conv+BN+
    sigmoid at the last tile and emit the (1, HWp) scale map."""
    ct = pl.program_id(1)
    HW = H * W

    @pl.when(ct == 0)
    def _():
        sum_ref[...] = jnp.zeros_like(sum_ref)

    part = _chunked_channel_sum(x_ref, c_chunk, HW)
    sum_ref[:, pl.ds(0, HW)] += part

    @pl.when(ct == pl.num_programs(1) - 1)
    def _():
        scale = _conv_bn_sigmoid(sum_ref, w_ref, bn_ref, H=H, W=W, HWp=HWp, C=C)
        scale_ref[0] = scale.astype(scale_ref.dtype)


def _gate_pass_kernel(scale_ref, x_ref, o_ref, *, HW, c_chunk):
    """Path B pass 2: gate each (1, c_tile, HW) block with the precomputed scale."""
    scale = scale_ref[0][:, :HW].astype(x_ref.dtype)   # (1, HW)
    _gated_store(x_ref, o_ref, scale, c_chunk, HW)


# --------------------------------------------------------------------------
# Wrapper
# --------------------------------------------------------------------------
def spatial_gate(x, conv_w, bn_scale, bn_bias, *, force_tiled=False):
    """x: (N, C, H, W); conv_w: (7, 7); bn_scale/bn_bias: folded eval-mode BN."""
    N, C, H, W = x.shape
    HW = H * W
    HWp = ((HW + 127) // 128) * 128
    itemsize = jnp.dtype(x.dtype).itemsize
    pack = _sublane_pack(x.dtype)

    # Lane-dense (N, C, HW) view; reshape only (no pad / slice -> no extra HBM
    # round-trip of the activation).
    # TODO(synk): for deep CBAM stages with tiny spatial maps (e.g. 7x7) an
    # (N, HW, C) layout with C on the lane axis would avoid lane-pad bytes on
    # v5e; not implemented here.
    x2 = x.reshape(N, C, HW)

    w_flat = conv_w.astype(jnp.float32).reshape(KSIZE * KSIZE)
    bn = jnp.stack([jnp.asarray(bn_scale, jnp.float32),
                    jnp.asarray(bn_bias, jnp.float32)])

    budget = _vmem_budget_bytes()
    block_bytes = C * HW * itemsize
    small_scratch = 4 * HWp * 4 + (1 << 20)          # conv scratch + margin
    fits_single = 4 * block_bytes + small_scratch <= budget

    # C-tile candidates for the two-pass path: sublane-pack multiples dividing C.
    c_tile = None
    cands = [d for d in range(pack, C, pack) if C % d == 0]
    for d in sorted(cands, reverse=True):
        if 6 * d * HW * itemsize + small_scratch <= budget:
            c_tile = d
            break
    if c_tile is None and cands:
        c_tile = cands[0]  # TODO(synk): add an HW-tile axis if even this overflows VMEM

    few_steps = (N < 4) and (block_bytes >= (4 << 20))
    use_tiled = (c_tile is not None) and (force_tiled or (not fits_single) or few_steps)

    if not use_tiled:
        # ---- Path A: grid=(N,), one block per batch element ----
        c_chunk = _pick_chunk(C, pack)
        out2 = pl.pallas_call(
            functools.partial(_spatial_gate_block_kernel,
                              H=H, W=W, HWp=HWp, c_chunk=c_chunk),
            out_shape=jax.ShapeDtypeStruct((N, C, HW), x.dtype),
            grid_spec=pltpu.PrefetchScalarGridSpec(
                num_scalar_prefetch=0,
                grid=(N,),
                in_specs=[
                    pl.BlockSpec(memory_space=pltpu.MemorySpace.SMEM),  # weights
                    pl.BlockSpec(memory_space=pltpu.MemorySpace.SMEM),  # folded BN
                    pl.BlockSpec((1, C, HW), lambda n: (n, 0, 0)),
                ],
                out_specs=pl.BlockSpec((1, C, HW), lambda n: (n, 0, 0)),
                scratch_shapes=[pltpu.VMEM((1, HWp), jnp.float32)]),
            compiler_params=pltpu.CompilerParams(
                dimension_semantics=("parallel",),
                vmem_limit_bytes=budget),
        )(w_flat, bn, x2)
        return out2.reshape(N, C, H, W)

    # ---- Path B: C-tiled two-pass scheme ----
    n_ct = C // c_tile
    c_chunk = _pick_chunk(c_tile, pack)

    # Pass 1: scale map per batch element (reads x once).
    scale_hbm = pl.pallas_call(
        functools.partial(_scale_pass_kernel,
                          H=H, W=W, HWp=HWp, C=C, c_chunk=c_chunk),
        out_shape=jax.ShapeDtypeStruct((N, 1, HWp), x.dtype),
        grid_spec=pltpu.PrefetchScalarGridSpec(
            num_scalar_prefetch=0,
            grid=(N, n_ct),
            in_specs=[
                pl.BlockSpec(memory_space=pltpu.MemorySpace.SMEM),
                pl.BlockSpec(memory_space=pltpu.MemorySpace.SMEM),
                pl.BlockSpec((1, c_tile, HW), lambda n, c: (n, c, 0)),
            ],
            out_specs=pl.BlockSpec((1, 1, HWp), lambda n, c: (n, 0, 0)),
            scratch_shapes=[pltpu.VMEM((1, HWp), jnp.float32)]),
        compiler_params=pltpu.CompilerParams(
            dimension_semantics=("parallel", "arbitrary"),
            vmem_limit_bytes=budget),
    )(w_flat, bn, x2)

    # Pass 2: gate (dominant traffic), both axes parallel for megacore sharding.
    out2 = pl.pallas_call(
        functools.partial(_gate_pass_kernel, HW=HW, c_chunk=c_chunk),
        out_shape=jax.ShapeDtypeStruct((N, C, HW), x.dtype),
        grid_spec=pltpu.PrefetchScalarGridSpec(
            num_scalar_prefetch=0,
            grid=(N, n_ct),
            in_specs=[
                pl.BlockSpec((1, 1, HWp), lambda n, c: (n, 0, 0)),
                pl.BlockSpec((1, c_tile, HW), lambda n, c: (n, c, 0)),
            ],
            out_specs=pl.BlockSpec((1, c_tile, HW), lambda n, c: (n, c, 0))),
        compiler_params=pltpu.CompilerParams(
            dimension_semantics=("parallel", "parallel"),
            vmem_limit_bytes=budget),
    )(scale_hbm, x2)
    return out2.reshape(N, C, H, W)


# --------------------------------------------------------------------------
# Pure-JAX reference (matches the PyTorch forward, BN in eval mode)
# --------------------------------------------------------------------------
def spatial_gate_ref(x, conv_w, bn_scale, bn_bias):
    mean = jnp.mean(x, axis=1, keepdims=True)              # (N,1,H,W)
    w = conv_w.reshape(1, 1, KSIZE, KSIZE)
    conv = lax.conv_general_dilated(
        mean, w, window_strides=(1, 1),
        padding=((PAD, PAD), (PAD, PAD)),
        dimension_numbers=("NCHW", "OIHW", "NCHW"))
    y = conv * bn_scale + bn_bias
    return x * jax.nn.sigmoid(y)


if __name__ == "__main__":
    key = jax.random.PRNGKey(0)
    k_x, k_w, k_x2 = jax.random.split(key, 3)

    # Conv2d(1, 1, 7, bias=False) weight, deterministic init.
    conv_w = jax.random.normal(k_w, (KSIZE, KSIZE), jnp.float32) * 0.1

    # BatchNorm2d(1) inference params at default init (gamma=1, beta=0,
    # running_mean=0, running_var=1, eps=1e-5) folded into scale/bias.
    eps = 1e-5
    gamma, beta, rmean, rvar = 1.0, 0.0, 0.0, 1.0
    bn_scale = gamma / jnp.sqrt(jnp.float32(rvar) + eps)
    bn_bias = beta - rmean * bn_scale

    # Test 1: canonical small shape (single-block path, HW % 128 == 0).
    xa = jax.random.normal(k_x, (2, 4, 16, 16), jnp.float32)
    outa = jax.block_until_ready(spatial_gate(xa, conv_w, bn_scale, bn_bias))
    refa = spatial_gate_ref(xa, conv_w, bn_scale, bn_bias)
    assert outa.shape == xa.shape and outa.dtype == xa.dtype
    assert jnp.allclose(outa, refa, atol=1e-5, rtol=1e-5), float(
        jnp.max(jnp.abs(outa - refa)))

    # Test 2: HW not a multiple of 128, chunked C; exercise both paths.
    xb = jax.random.normal(k_x2, (1, 24, 10, 10), jnp.float32)
    refb = spatial_gate_ref(xb, conv_w, bn_scale, bn_bias)
    for forced in (False, True):
        outb = jax.block_until_ready(
            spatial_gate(xb, conv_w, bn_scale, bn_bias, force_tiled=forced))
        assert outb.shape == xb.shape and outb.dtype == xb.dtype
        assert jnp.allclose(outb, refb, atol=1e-5, rtol=1e-5), (
            forced, float(jnp.max(jnp.abs(outb - refb))))

    print("KERNEL_OK")
</pallas_src>

<mosaic_0001>
module attributes {stable_mosaic.version = 11 : i64} {
  func.func @_spatial_gate_block_kernel(%arg0: i32, %arg1: memref<49xf32, #tpu.memory_space<smem>>, %arg2: memref<2xf32, #tpu.memory_space<smem>>, %arg3: memref<1x4x256xf32, #tpu.memory_space<vmem>>, %arg4: memref<1x4x256xf32, #tpu.memory_space<vmem>>, %arg5: memref<1x256xf32, #tpu.memory_space<vmem>>) attributes {dimension_semantics = [#tpu.dimension_semantics<parallel>], iteration_bounds = array<i64: 2>, scalar_prefetch = 0 : i64, scratch_operands = 1 : i64, tpu.core_type = #tpu.core_type<tc>, window_params = [{transform_indices = @transform_0, window_bounds = array<i64: 49>}, {transform_indices = @transform_1, window_bounds = array<i64: 2>}, {transform_indices = @transform_2, window_bounds = array<i64: 1, 4, 256>}, {transform_indices = @transform_3, window_bounds = array<i64: 1, 4, 256>}]} {
    %c0 = arith.constant 0 : index
    %c0_0 = arith.constant 0 : index
    %c0_1 = arith.constant 0 : index
    %0 = vector.load %arg3[%c0, %c0_0, %c0_1] : memref<1x4x256xf32, #tpu.memory_space<vmem>>, vector<1x4x256xf32>
    %1 = vector.shape_cast %0 : vector<1x4x256xf32> to vector<4x256xf32>
    %cst = arith.constant dense<0.000000e+00> : vector<256xf32>
    %2 = vector.multi_reduction <add>, %1, %cst [0] : vector<4x256xf32> to vector<256xf32>
    %3 = vector.shape_cast %2 : vector<256xf32> to vector<1x256xf32>
    %c0_2 = arith.constant 0 : index
    %c0_3 = arith.constant 0 : index
    %4 = vector.load %arg5[%c0_2, %c0_3] : memref<1x256xf32, #tpu.memory_space<vmem>>, vector<1x256xf32>
    tpu.vector_store %arg5[%c0_2, %c0_3], %3 {strides = array<i32>} : memref<1x256xf32, #tpu.memory_space<vmem>>, vector<1x256xf32>,
    %c0_4 = arith.constant 0 : index
    %c0_5 = arith.constant 0 : index
    %5 = vector.load %arg5[%c0_4, %c0_5] : memref<1x256xf32, #tpu.memory_space<vmem>>, vector<1x256xf32>
    %cst_6 = arith.constant 2.500000e-01 : f32
    %6 = vector.broadcast %cst_6 : f32 to vector<1x256xf32>
    %7 = arith.mulf %5, %6 : vector<1x256xf32>
    %8 = tpu.iota {dimensions = array<i32: 1>} : vector<1x256xi32>
    %c16_i32 = arith.constant 16 : i32
    %c0_i32 = arith.constant 0 : i32
    %9 = arith.cmpi eq, %c16_i32, %c0_i32 : i32
    %c1_i32 = arith.constant 1 : i32
    %10 = arith.select %9, %c1_i32, %c16_i32 : i32
    %11 = vector.broadcast %10 : i32 to vector<1x256xi32>
    %12 = arith.remsi %8, %11 : vector<1x256xi32>
    %c0_i32_7 = arith.constant 0 : i32
    %13 = vector.broadcast %c0_i32_7 : i32 to vector<1x256xi32>
    %14 = arith.cmpi ne, %12, %13 : vector<1x256xi32>
    %c0_i32_8 = arith.constant 0 : i32
    %15 = vector.broadcast %c0_i32_8 : i32 to vector<1x256xi32>
    %16 = arith.cmpi slt, %12, %15 : vector<1x256xi32>
    %c0_i32_9 = arith.constant 0 : i32
    %17 = arith.cmpi slt, %10, %c0_i32_9 : i32
    %18 = vector.broadcast %17 : i1 to vector<1x256xi1>
    %19 = vector.broadcast %18 : vector<1x256xi1> to vector<1x256xi1>
    %20 = arith.xori %16, %19 : vector<1x256xi1>
    %21 = arith.andi %20, %14 : vector<1x256xi1>
    %22 = vector.broadcast %10 : i32 to vector<1x256xi32>
    %23 = arith.addi %12, %22 : vector<1x256xi32>
    %24 = arith.select %21, %23, %12 : vector<1x256xi1>, vector<1x256xi32>
    %c48_i32 = arith.constant 48 : i32
    %25 = tpu.dynamic_rotate %7 by %c48_i32 dim 1 : vector<1x256xf32>, i32 -> vector<1x256xf32>
    %c48_i32_10 = arith.constant 48 : i32
    %26 = vector.broadcast %c48_i32_10 : i32 to vector<1x256xi32>
    %27 = arith.cmpi sge, %8, %26 : vector<1x256xi32>
    %c304_i32 = arith.constant 304 : i32
    %28 = vector.broadcast %c304_i32 : i32 to vector<1x256xi32>
    %29 = arith.cmpi slt, %8, %28 : vector<1x256xi32>
    %30 = arith.andi %27, %29 : vector<1x256xi1>
    %cst_11 = arith.constant 0.000000e+00 : f32
    %31 = vector.broadcast %cst_11 : f32 to vector<1x256xf32>
    %32 = arith.select %30, %25, %31 : vector<1x256xi1>, vector<1x256xf32>
    %c32_i32 = arith.constant 32 : i32
    %33 = tpu.dynamic_rotate %7 by %c32_i32 dim 1 : vector<1x256xf32>, i32 -> vector<1x256xf32>
    %c32_i32_12 = arith.constant 32 : i32
    %34 = vector.broadcast %c32_i32_12 : i32 to vector<1x256xi32>
    %35 = arith.cmpi sge, %8, %34 : vector<1x256xi32>
    %c288_i32 = arith.constant 288 : i32
    %36 = vector.broadcast %c288_i32 : i32 to vector<1x256xi32>
    %37 = arith.cmpi slt, %8, %36 : vector<1x256xi32>
    %38 = arith.andi %35, %37 : vector<1x256xi1>
    %cst_13 = arith.constant 0.000000e+00 : f32
    %39 = vector.broadcast %cst_13 : f32 to vector<1x256xf32>
    %40 = arith.select %38, %33, %39 : vector<1x256xi1>, vector<1x256xf32>
    %c16_i32_14 = arith.constant 16 : i32
    %41 = tpu.dynamic_rotate %7 by %c16_i32_14 dim 1 : vector<1x256xf32>, i32 -> vector<1x256xf32>
    %c16_i32_15 = arith.constant 16 : i32
    %42 = vector.broadcast %c16_i32_15 : i32 to vector<1x256xi32>
    %43 = arith.cmpi sge, %8, %42 : vector<1x256xi32>
    %c272_i32 = arith.constant 272 : i32
    %44 = vector.broadcast %c272_i32 : i32 to vector<1x256xi32>
    %45 = arith.cmpi slt, %8, %44 : vector<1x256xi32>
    %46 = arith.andi %43, %45 : vector<1x256xi1>
    %cst_16 = arith.constant 0.000000e+00 : f32
    %47 = vector.broadcast %cst_16 : f32 to vector<1x256xf32>
    %48 = arith.select %46, %41, %47 : vector<1x256xi1>, vector<1x256xf32>
    %c0_i32_17 = arith.constant 0 : i32
    %49 = vector.broadcast %c0_i32_17 : i32 to vector<1x256xi32>
    %50 = arith.cmpi sge, %8, %49 : vector<1x256xi32>
    %c256_i32 = arith.constant 256 : i32
    %51 = vector.broadcast %c256_i32 : i32 to vector<1x256xi32>
    %52 = arith.cmpi slt, %8, %51 : vector<1x256xi32>
    %53 = arith.andi %50, %52 : vector<1x256xi1>
    %cst_18 = arith.constant 0.000000e+00 : f32
    %54 = vector.broadcast %cst_18 : f32 to vector<1x256xf32>
    %55 = arith.select %53, %7, %54 : vector<1x256xi1>, vector<1x256xf32>
    %c240_i32 = arith.constant 240 : i32
    %56 = tpu.dynamic_rotate %7 by %c240_i32 dim 1 : vector<1x256xf32>, i32 -> vector<1x256xf32>
    %c-16_i32 = arith.constant -16 : i32
    %57 = vector.broadcast %c-16_i32 : i32 to vector<1x256xi32>
    %58 = arith.cmpi sge, %8, %57 : vector<1x256xi32>
    %c240_i32_19 = arith.constant 240 : i32
    %59 = vector.broadcast %c240_i32_19 : i32 to vector<1x256xi32>
    %60 = arith.cmpi slt, %8, %59 : vector<1x256xi32>
    %61 = arith.andi %58, %60 : vector<1x256xi1>
    %cst_20 = arith.constant 0.000000e+00 : f32
    %62 = vector.broadcast %cst_20 : f32 to vector<1x256xf32>
    %63 = arith.select %61, %56, %62 : vector<1x256xi1>, vector<1x256xf32>
    %c224_i32 = arith.constant 224 : i32
    %64 = tpu.dynamic_rotate %7 by %c224_i32 dim 1 : vector<1x256xf32>, i32 -> vector<1x256xf32>
    %c-32_i32 = arith.constant -32 : i32
    %65 = vector.broadcast %c-32_i32 : i32 to vector<1x256xi32>
    %66 = arith.cmpi sge, %8, %65 : vector<1x256xi32>
    %c224_i32_21 = arith.constant 224 : i32
    %67 = vector.broadcast %c224_i32_21 : i32 to vector<1x256xi32>
    %68 = arith.cmpi slt, %8, %67 : vector<1x256xi32>
    %69 = arith.andi %66, %68 : vector<1x256xi1>
    %cst_22 = arith.constant 0.000000e+00 : f32
    %70 = vector.broadcast %cst_22 : f32 to vector<1x256xf32>
    %71 = arith.select %69, %64, %70 : vector<1x256xi1>, vector<1x256xf32>
    %c208_i32 = arith.constant 208 : i32
    %72 = tpu.dynamic_rotate %7 by %c208_i32 dim 1 : vector<1x256xf32>, i32 -> vector<1x256xf32>
    %c-48_i32 = arith.constant -48 : i32
    %73 = vector.broadcast %c-48_i32 : i32 to vector<1x256xi32>
    %74 = arith.cmpi sge, %8, %73 : vector<1x256xi32>
    %c208_i32_23 = arith.constant 208 : i32
    %75 = vector.broadcast %c208_i32_23 : i32 to vector<1x256xi32>
    %76 = arith.cmpi slt, %8, %75 : vector<1x256xi32>
    %77 = arith.andi %74, %76 : vector<1x256xi1>
    %cst_24 = arith.constant 0.000000e+00 : f32
    %78 = vector.broadcast %cst_24 : f32 to vector<1x256xf32>
    %79 = arith.select %77, %72, %78 : vector<1x256xi1>, vector<1x256xf32>
    %cst_25 = arith.constant 0.000000e+00 : f32
    %80 = vector.broadcast %cst_25 : f32 to vector<1x256xf32>
    %c0_26 = arith.constant 0 : index
    %81 = memref.load %arg1[%c0_26] : memref<49xf32, #tpu.memory_space<smem>>
    %82 = vector.broadcast %81 : f32 to vector<1x256xf32>
    %83 = arith.mulf %32, %82 : vector<1x256xf32>
    %c7 = arith.constant 7 : index
    %84 = memref.load %arg1[%c7] : memref<49xf32, #tpu.memory_space<smem>>
    %85 = vector.broadcast %84 : f32 to vector<1x256xf32>
    %86 = arith.mulf %40, %85 : vector<1x256xf32>
    %87 = arith.addf %83, %86 : vector<1x256xf32>
    %c14 = arith.constant 14 : index
    %88 = memref.load %arg1[%c14] : memref<49xf32, #tpu.memory_space<smem>>
    %89 = vector.broadcast %88 : f32 to vector<1x256xf32>
    %90 = arith.mulf %48, %89 : vector<1x256xf32>
    %91 = arith.addf %87, %90 : vector<1x256xf32>
    %c21 = arith.constant 21 : index
    %92 = memref.load %arg1[%c21] : memref<49xf32, #tpu.memory_space<smem>>
    %93 = vector.broadcast %92 : f32 to vector<1x256xf32>
    %94 = arith.mulf %55, %93 : vector<1x256xf32>
    %95 = arith.addf %91, %94 : vector<1x256xf32>
    %c28 = arith.constant 28 : index
    %96 = memref.load %arg1[%c28] : memref<49xf32, #tpu.memory_space<smem>>
    %97 = vector.broadcast %96 : f32 to vector<1x256xf32>
    %98 = arith.mulf %63, %97 : vector<1x256xf32>
    %99 = arith.addf %95, %98 : vector<1x256xf32>
    %c35 = arith.constant 35 : index
    %100 = memref.load %arg1[%c35] : memref<49xf32, #tpu.memory_space<smem>>
    %101 = vector.broadcast %100 : f32 to vector<1x256xf32>
    %102 = arith.mulf %71, %101 : vector<1x256xf32>
    %103 = arith.addf %99, %102 : vector<1x256xf32>
    %c42 = arith.constant 42 : index
    %104 = memref.load %arg1[%c42] : memref<49xf32, #tpu.memory_space<smem>>
    %105 = vector.broadcast %104 : f32 to vector<1x256xf32>
    %106 = arith.mulf %79, %105 : vector<1x256xf32>
    %107 = arith.addf %103, %106 : vector<1x256xf32>
    %c3_i32 = arith.constant 3 : i32
    %108 = tpu.dynamic_rotate %107 by %c3_i32 dim 1 : vector<1x256xf32>, i32 -> vector<1x256xf32>
    %c3_i32_27 = arith.constant 3 : i32
    %109 = vector.broadcast %c3_i32_27 : i32 to vector<1x256xi32>
    %110 = arith.cmpi sge, %24, %109 : vector<1x256xi32>
    %c19_i32 = arith.constant 19 : i32
    %111 = vector.broadcast %c19_i32 : i32 to vector<1x256xi32>
    %112 = arith.cmpi slt, %24, %111 : vector<1x256xi32>
    %113 = arith.andi %110, %112 : vector<1x256xi1>
    %cst_28 = arith.constant 0.000000e+00 : f32
    %114 = vector.broadcast %cst_28 : f32 to vector<1x256xf32>
    %115 = arith.select %113, %108, %114 : vector<1x256xi1>, vector<1x256xf32>
    %116 = arith.addf %80, %115 : vector<1x256xf32>
    %c1 = arith.constant 1 : index
    %117 = memref.load %arg1[%c1] : memref<49xf32, #tpu.memory_space<smem>>
    %118 = vector.broadcast %117 : f32 to vector<1x256xf32>
    %119 = arith.mulf %32, %118 : vector<1x256xf32>
    %c8 = arith.constant 8 : index
    %120 = memref.load %arg1[%c8] : memref<49xf32, #tpu.memory_space<smem>>
    %121 = vector.broadcast %120 : f32 to vector<1x256xf32>
    %122 = arith.mulf %40, %121 : vector<1x256xf32>
    %123 = arith.addf %119, %122 : vector<1x256xf32>
    %c15 = arith.constant 15 : index
    %124 = memref.load %arg1[%c15] : memref<49xf32, #tpu.memory_space<smem>>
    %125 = vector.broadcast %124 : f32 to vector<1x256xf32>
    %126 = arith.mulf %48, %125 : vector<1x256xf32>
    %127 = arith.addf %123, %126 : vector<1x256xf32>
    %c22 = arith.constant 22 : index
    %128 = memref.load %arg1[%c22] : memref<49xf32, #tpu.memory_space<smem>>
    %129 = vector.broadcast %128 : f32 to vector<1x256xf32>
    %130 = arith.mulf %55, %129 : vector<1x256xf32>
    %131 = arith.addf %127, %130 : vector<1x256xf32>
    %c29 = arith.constant 29 : index
    %132 = memref.load %arg1[%c29] : memref<49xf32, #tpu.memory_space<smem>>
    %133 = vector.broadcast %132 : f32 to vector<1x256xf32>
    %134 = arith.mulf %63, %133 : vector<1x256xf32>
    %135 = arith.addf %131, %134 : vector<1x256xf32>
    %c36 = arith.constant 36 : index
    %136 = memref.load %arg1[%c36] : memref<49xf32, #tpu.memory_space<smem>>
    %137 = vector.broadcast %136 : f32 to vector<1x256xf32>
    %138 = arith.mulf %71, %137 : vector<1x256xf32>
    %139 = arith.addf %135, %138 : vector<1x256xf32>
    %c43 = arith.constant 43 : index
    %140 = memref.load %arg1[%c43] : memref<49xf32, #tpu.memory_space<smem>>
    %141 = vector.broadcast %140 : f32 to vector<1x256xf32>
    %142 = arith.mulf %79, %141 : vector<1x256xf32>
    %143 = arith.addf %139, %142 : vector<1x256xf32>
    %c2_i32 = arith.constant 2 : i32
    %144 = tpu.dynamic_rotate %143 by %c2_i32 dim 1 : vector<1x256xf32>, i32 -> vector<1x256xf32>
    %c2_i32_29 = arith.constant 2 : i32
    %145 = vector.broadcast %c2_i32_29 : i32 to vector<1x256xi32>
    %146 = arith.cmpi sge, %24, %145 : vector<1x256xi32>
    %c18_i32 = arith.constant 18 : i32
    %147 = vector.broadcast %c18_i32 : i32 to vector<1x256xi32>
    %148 = arith.cmpi slt, %24, %147 : vector<1x256xi32>
    %149 = arith.andi %146, %148 : vector<1x256xi1>
    %cst_30 = arith.constant 0.000000e+00 : f32
    %150 = vector.broadcast %cst_30 : f32 to vector<1x256xf32>
    %151 = arith.select %149, %144, %150 : vector<1x256xi1>, vector<1x256xf32>
    %152 = arith.addf %116, %151 : vector<1x256xf32>
    %c2 = arith.constant 2 : index
    %153 = memref.load %arg1[%c2] : memref<49xf32, #tpu.memory_space<smem>>
    %154 = vector.broadcast %153 : f32 to vector<1x256xf32>
    %155 = arith.mulf %32, %154 : vector<1x256xf32>
    %c9 = arith.constant 9 : index
    %156 = memref.load %arg1[%c9] : memref<49xf32, #tpu.memory_space<smem>>
    %157 = vector.broadcast %156 : f32 to vector<1x256xf32>
    %158 = arith.mulf %40, %157 : vector<1x256xf32>
    %159 = arith.addf %155, %158 : vector<1x256xf32>
    %c16 = arith.constant 16 : index
    %160 = memref.load %arg1[%c16] : memref<49xf32, #tpu.memory_space<smem>>
    %161 = vector.broadcast %160 : f32 to vector<1x256xf32>
    %162 = arith.mulf %48, %161 : vector<1x256xf32>
    %163 = arith.addf %159, %162 : vector<1x256xf32>
    %c23 = arith.constant 23 : index
    %164 = memref.load %arg1[%c23] : memref<49xf32, #tpu.memory_space<smem>>
    %165 = vector.broadcast %164 : f32 to vector<1x256xf32>
    %166 = arith.mulf %55, %165 : vector<1x256xf32>
    %167 = arith.addf %163, %166 : vector<1x256xf32>
    %c30 = arith.constant 30 : index
    %168 = memref.load %arg1[%c30] : memref<49xf32, #tpu.memory_space<smem>>
    %169 = vector.broadcast %168 : f32 to vector<1x256xf32>
    %170 = arith.mulf %63, %169 : vector<1x256xf32>
    %171 = arith.addf %167, %170 : vector<1x256xf32>
    %c37 = arith.constant 37 : index
    %172 = memref.load %arg1[%c37] : memref<49xf32, #tpu.memory_space<smem>>
    %173 = vector.broadcast %172 : f32 to vector<1x256xf32>
    %174 = arith.mulf %71, %173 : vector<1x256xf32>
    %175 = arith.addf %171, %174 : vector<1x256xf32>
    %c44 = arith.constant 44 : index
    %176 = memref.load %arg1[%c44] : memref<49xf32, #tpu.memory_space<smem>>
    %177 = vector.broadcast %176 : f32 to vector<1x256xf32>
    %178 = arith.mulf %79, %177 : vector<1x256xf32>
    %179 = arith.addf %175, %178 : vector<1x256xf32>
    %c1_i32_31 = arith.constant 1 : i32
    %180 = tpu.dynamic_rotate %179 by %c1_i32_31 dim 1 : vector<1x256xf32>, i32 -> vector<1x256xf32>
    %c1_i32_32 = arith.constant 1 : i32
    %181 = vector.broadcast %c1_i32_32 : i32 to vector<1x256xi32>
    %182 = arith.cmpi sge, %24, %181 : vector<1x256xi32>
    %c17_i32 = arith.constant 17 : i32
    %183 = vector.broadcast %c17_i32 : i32 to vector<1x256xi32>
    %184 = arith.cmpi slt, %24, %183 : vector<1x256xi32>
    %185 = arith.andi %182, %184 : vector<1x256xi1>
    %cst_33 = arith.constant 0.000000e+00 : f32
    %186 = vector.broadcast %cst_33 : f32 to vector<1x256xf32>
    %187 = arith.select %185, %180, %186 : vector<1x256xi1>, vector<1x256xf32>
    %188 = arith.addf %152, %187 : vector<1x256xf32>
    %c3 = arith.constant 3 : index
    %189 = memref.load %arg1[%c3] : memref<49xf32, #tpu.memory_space<smem>>
    %190 = vector.broadcast %189 : f32 to vector<1x256xf32>
    %191 = arith.mulf %32, %190 : vector<1x256xf32>
    %c10 = arith.constant 10 : index
    %192 = memref.load %arg1[%c10] : memref<49xf32, #tpu.memory_space<smem>>
    %193 = vector.broadcast %192 : f32 to vector<1x256xf32>
    %194 = arith.mulf %40, %193 : vector<1x256xf32>
    %195 = arith.addf %191, %194 : vector<1x256xf32>
    %c17 = arith.constant 17 : index
    %196 = memref.load %arg1[%c17] : memref<49xf32, #tpu.memory_space<smem>>
    %197 = vector.broadcast %196 : f32 to vector<1x256xf32>
    %198 = arith.mulf %48, %197 : vector<1x256xf32>
    %199 = arith.addf %195, %198 : vector<1x256xf32>
    %c24 = arith.constant 24 : index
    %200 = memref.load %arg1[%c24] : memref<49xf32, #tpu.memory_space<smem>>
    %201 = vector.broadcast %200 : f32 to vector<1x256xf32>
    %202 = arith.mulf %55, %201 : vector<1x256xf32>
    %203 = arith.addf %199, %202 : vector<1x256xf32>
    %c31 = arith.constant 31 : index
    %204 = memref.load %arg1[%c31] : memref<49xf32, #tpu.memory_space<smem>>
    %205 = vector.broadcast %204 : f32 to vector<1x256xf32>
    %206 = arith.mulf %63, %205 : vector<1x256xf32>
    %207 = arith.addf %203, %206 : vector<1x256xf32>
    %c38 = arith.constant 38 : index
    %208 = memref.load %arg1[%c38] : memref<49xf32, #tpu.memory_space<smem>>
    %209 = vector.broadcast %208 : f32 to vector<1x256xf32>
    %210 = arith.mulf %71, %209 : vector<1x256xf32>
    %211 = arith.addf %207, %210 : vector<1x256xf32>
    %c45 = arith.constant 45 : index
    %212 = memref.load %arg1[%c45] : memref<49xf32, #tpu.memory_space<smem>>
    %213 = vector.broadcast %212 : f32 to vector<1x256xf32>
    %214 = arith.mulf %79, %213 : vector<1x256xf32>
    %215 = arith.addf %211, %214 : vector<1x256xf32>
    %c0_i32_34 = arith.constant 0 : i32
    %216 = vector.broadcast %c0_i32_34 : i32 to vector<1x256xi32>
    %217 = arith.cmpi sge, %24, %216 : vector<1x256xi32>
    %c16_i32_35 = arith.constant 16 : i32
    %218 = vector.broadcast %c16_i32_35 : i32 to vector<1x256xi32>
    %219 = arith.cmpi slt, %24, %218 : vector<1x256xi32>
    %220 = arith.andi %217, %219 : vector<1x256xi1>
    %cst_36 = arith.constant 0.000000e+00 : f32
    %221 = vector.broadcast %cst_36 : f32 to vector<1x256xf32>
    %222 = arith.select %220, %215, %221 : vector<1x256xi1>, vector<1x256xf32>
    %223 = arith.addf %188, %222 : vector<1x256xf32>
    %c4 = arith.constant 4 : index
    %224 = memref.load %arg1[%c4] : memref<49xf32, #tpu.memory_space<smem>>
    %225 = vector.broadcast %224 : f32 to vector<1x256xf32>
    %226 = arith.mulf %32, %225 : vector<1x256xf32>
    %c11 = arith.constant 11 : index
    %227 = memref.load %arg1[%c11] : memref<49xf32, #tpu.memory_space<smem>>
    %228 = vector.broadcast %227 : f32 to vector<1x256xf32>
    %229 = arith.mulf %40, %228 : vector<1x256xf32>
    %230 = arith.addf %226, %229 : vector<1x256xf32>
    %c18 = arith.constant 18 : index
    %231 = memref.load %arg1[%c18] : memref<49xf32, #tpu.memory_space<smem>>
    %232 = vector.broadcast %231 : f32 to vector<1x256xf32>
    %233 = arith.mulf %48, %232 : vector<1x256xf32>
    %234 = arith.addf %230, %233 : vector<1x256xf32>
    %c25 = arith.constant 25 : index
    %235 = memref.load %arg1[%c25] : memref<49xf32, #tpu.memory_space<smem>>
    %236 = vector.broadcast %235 : f32 to vector<1x256xf32>
    %237 = arith.mulf %55, %236 : vector<1x256xf32>
    %238 = arith.addf %234, %237 : vector<1x256xf32>
    %c32 = arith.constant 32 : index
    %239 = memref.load %arg1[%c32] : memref<49xf32, #tpu.memory_space<smem>>
    %240 = vector.broadcast %239 : f32 to vector<1x256xf32>
    %241 = arith.mulf %63, %240 : vector<1x256xf32>
    %242 = arith.addf %238, %241 : vector<1x256xf32>
    %c39 = arith.constant 39 : index
    %243 = memref.load %arg1[%c39] : memref<49xf32, #tpu.memory_space<smem>>
    %244 = vector.broadcast %243 : f32 to vector<1x256xf32>
    %245 = arith.mulf %71, %244 : vector<1x256xf32>
    %246 = arith.addf %242, %245 : vector<1x256xf32>
    %c46 = arith.constant 46 : index
    %247 = memref.load %arg1[%c46] : memref<49xf32, #tpu.memory_space<smem>>
    %248 = vector.broadcast %247 : f32 to vector<1x256xf32>
    %249 = arith.mulf %79, %248 : vector<1x256xf32>
    %250 = arith.addf %246, %249 : vector<1x256xf32>
    %c255_i32 = arith.constant 255 : i32
    %251 = tpu.dynamic_rotate %250 by %c255_i32 dim 1 : vector<1x256xf32>, i32 -> vector<1x256xf32>
    %c-1_i32 = arith.constant -1 : i32
    %252 = vector.broadcast %c-1_i32 : i32 to vector<1x256xi32>
    %253 = arith.cmpi sge, %24, %252 : vector<1x256xi32>
    %c15_i32 = arith.constant 15 : i32
    %254 = vector.broadcast %c15_i32 : i32 to vector<1x256xi32>
    %255 = arith.cmpi slt, %24, %254 : vector<1x256xi32>
    %256 = arith.andi %253, %255 : vector<1x256xi1>
    %cst_37 = arith.constant 0.000000e+00 : f32
    %257 = vector.broadcast %cst_37 : f32 to vector<1x256xf32>
    %258 = arith.select %256, %251, %257 : vector<1x256xi1>, vector<1x256xf32>
    %259 = arith.addf %223, %258 : vector<1x256xf32>
    %c5 = arith.constant 5 : index
    %260 = memref.load %arg1[%c5] : memref<49xf32, #tpu.memory_space<smem>>
    %261 = vector.broadcast %260 : f32 to vector<1x256xf32>
    %262 = arith.mulf %32, %261 : vector<1x256xf32>
    %c12 = arith.constant 12 : index
    %263 = memref.load %arg1[%c12] : memref<49xf32, #tpu.memory_space<smem>>
    %264 = vector.broadcast %263 : f32 to vector<1x256xf32>
    %265 = arith.mulf %40, %264 : vector<1x256xf32>
    %266 = arith.addf %262, %265 : vector<1x256xf32>
    %c19 = arith.constant 19 : index
    %267 = memref.load %arg1[%c19] : memref<49xf32, #tpu.memory_space<smem>>
    %268 = vector.broadcast %267 : f32 to vector<1x256xf32>
    %269 = arith.mulf %48, %268 : vector<1x256xf32>
    %270 = arith.addf %266, %269 : vector<1x256xf32>
    %c26 = arith.constant 26 : index
    %271 = memref.load %arg1[%c26] : memref<49xf32, #tpu.memory_space<smem>>
    %272 = vector.broadcast %271 : f32 to vector<1x256xf32>
    %273 = arith.mulf %55, %272 : vector<1x256xf32>
    %274 = arith.addf %270, %273 : vector<1x256xf32>
    %c33 = arith.constant 33 : index
    %275 = memref.load %arg1[%c33] : memref<49xf32, #tpu.memory_space<smem>>
    %276 = vector.broadcast %275 : f32 to vector<1x256xf32>
    %277 = arith.mulf %63, %276 : vector<1x256xf32>
    %278 = arith.addf %274, %277 : vector<1x256xf32>
    %c40 = arith.constant 40 : index
    %279 = memref.load %arg1[%c40] : memref<49xf32, #tpu.memory_space<smem>>
    %280 = vector.broadcast %279 : f32 to vector<1x256xf32>
    %281 = arith.mulf %71, %280 : vector<1x256xf32>
    %282 = arith.addf %278, %281 : vector<1x256xf32>
    %c47 = arith.constant 47 : index
    %283 = memref.load %arg1[%c47] : memref<49xf32, #tpu.memory_space<smem>>
    %284 = vector.broadcast %283 : f32 to vector<1x256xf32>
    %285 = arith.mulf %79, %284 : vector<1x256xf32>
    %286 = arith.addf %282, %285 : vector<1x256xf32>
    %c254_i32 = arith.constant 254 : i32
    %287 = tpu.dynamic_rotate %286 by %c254_i32 dim 1 : vector<1x256xf32>, i32 -> vector<1x256xf32>
    %c-2_i32 = arith.constant -2 : i32
    %288 = vector.broadcast %c-2_i32 : i32 to vector<1x256xi32>
    %289 = arith.cmpi sge, %24, %288 : vector<1x256xi32>
    %c14_i32 = arith.constant 14 : i32
    %290 = vector.broadcast %c14_i32 : i32 to vector<1x256xi32>
    %291 = arith.cmpi slt, %24, %290 : vector<1x256xi32>
    %292 = arith.andi %289, %291 : vector<1x256xi1>
    %cst_38 = arith.constant 0.000000e+00 : f32
    %293 = vector.broadcast %cst_38 : f32 to vector<1x256xf32>
    %294 = arith.select %292, %287, %293 : vector<1x256xi1>, vector<1x256xf32>
    %295 = arith.addf %259, %294 : vector<1x256xf32>
    %c6 = arith.constant 6 : index
    %296 = memref.load %arg1[%c6] : memref<49xf32, #tpu.memory_space<smem>>
    %297 = vector.broadcast %296 : f32 to vector<1x256xf32>
    %298 = arith.mulf %32, %297 : vector<1x256xf32>
    %c13 = arith.constant 13 : index
    %299 = memref.load %arg1[%c13] : memref<49xf32, #tpu.memory_space<smem>>
    %300 = vector.broadcast %299 : f32 to vector<1x256xf32>
    %301 = arith.mulf %40, %300 : vector<1x256xf32>
    %302 = arith.addf %298, %301 : vector<1x256xf32>
    %c20 = arith.constant 20 : index
    %303 = memref.load %arg1[%c20] : memref<49xf32, #tpu.memory_space<smem>>
    %304 = vector.broadcast %303 : f32 to vector<1x256xf32>
    %305 = arith.mulf %48, %304 : vector<1x256xf32>
    %306 = arith.addf %302, %305 : vector<1x256xf32>
    %c27 = arith.constant 27 : index
    %307 = memref.load %arg1[%c27] : memref<49xf32, #tpu.memory_space<smem>>
    %308 = vector.broadcast %307 : f32 to vector<1x256xf32>
    %309 = arith.mulf %55, %308 : vector<1x256xf32>
    %310 = arith.addf %306, %309 : vector<1x256xf32>
    %c34 = arith.constant 34 : index
    %311 = memref.load %arg1[%c34] : memref<49xf32, #tpu.memory_space<smem>>
    %312 = vector.broadcast %311 : f32 to vector<1x256xf32>
    %313 = arith.mulf %63, %312 : vector<1x256xf32>
    %314 = arith.addf %310, %313 : vector<1x256xf32>
    %c41 = arith.constant 41 : index
    %315 = memref.load %arg1[%c41] : memref<49xf32, #tpu.memory_space<smem>>
    %316 = vector.broadcast %315 : f32 to vector<1x256xf32>
    %317 = arith.mulf %71, %316 : vector<1x256xf32>
    %318 = arith.addf %314, %317 : vector<1x256xf32>
    %c48 = arith.constant 48 : index
    %319 = memref.load %arg1[%c48] : memref<49xf32, #tpu.memory_space<smem>>
    %320 = vector.broadcast %319 : f32 to vector<1x256xf32>
    %321 = arith.mulf %79, %320 : vector<1x256xf32>
    %322 = arith.addf %318, %321 : vector<1x256xf32>
    %c253_i32 = arith.constant 253 : i32
    %323 = tpu.dynamic_rotate %322 by %c253_i32 dim 1 : vector<1x256xf32>, i32 -> vector<1x256xf32>
    %c-3_i32 = arith.constant -3 : i32
    %324 = vector.broadcast %c-3_i32 : i32 to vector<1x256xi32>
    %325 = arith.cmpi sge, %24, %324 : vector<1x256xi32>
    %c13_i32 = arith.constant 13 : i32
    %326 = vector.broadcast %c13_i32 : i32 to vector<1x256xi32>
    %327 = arith.cmpi slt, %24, %326 : vector<1x256xi32>
    %328 = arith.andi %325, %327 : vector<1x256xi1>
    %cst_39 = arith.constant 0.000000e+00 : f32
    %329 = vector.broadcast %cst_39 : f32 to vector<1x256xf32>
    %330 = arith.select %328, %323, %329 : vector<1x256xi1>, vector<1x256xf32>
    %331 = arith.addf %295, %330 : vector<1x256xf32>
    %c0_40 = arith.constant 0 : index
    %332 = memref.load %arg2[%c0_40] : memref<2xf32, #tpu.memory_space<smem>>
    %333 = vector.broadcast %332 : f32 to vector<1x256xf32>
    %334 = arith.mulf %331, %333 : vector<1x256xf32>
    %c1_41 = arith.constant 1 : index
    %335 = memref.load %arg2[%c1_41] : memref<2xf32, #tpu.memory_space<smem>>
    %336 = vector.broadcast %335 : f32 to vector<1x256xf32>
    %337 = arith.addf %334, %336 : vector<1x256xf32>
    %338 = arith.negf %337 : vector<1x256xf32>
    %339 = math.exp %338 : vector<1x256xf32>
    %cst_42 = arith.constant 1.000000e+00 : f32
    %340 = vector.broadcast %cst_42 : f32 to vector<1x256xf32>
    %341 = arith.addf %340, %339 : vector<1x256xf32>
    %342 = arith.divf %340, %341 : vector<1x256xf32>
    %c0_43 = arith.constant 0 : index
    %c0_44 = arith.constant 0 : index
    %c0_45 = arith.constant 0 : index
    %343 = vector.load %arg3[%c0_43, %c0_44, %c0_45] : memref<1x4x256xf32, #tpu.memory_space<vmem>>, vector<1x4x256xf32>
    %344 = vector.shape_cast %343 : vector<1x4x256xf32> to vector<4x256xf32>
    %345 = vector.broadcast %342 : vector<1x256xf32> to vector<4x256xf32>
    %346 = arith.mulf %344, %345 : vector<4x256xf32>
    %c0_46 = arith.constant 0 : index
    %c0_47 = arith.constant 0 : index
    %c0_48 = arith.constant 0 : index
    %347 = vector.load %arg4[%c0_46, %c0_47, %c0_48] : memref<1x4x256xf32, #tpu.memory_space<vmem>>, vector<1x4x256xf32>
    %348 = vector.shape_cast %347 : vector<1x4x256xf32> to vector<4x256xf32>
    %349 = vector.shape_cast %346 : vector<4x256xf32> to vector<1x4x256xf32>
    tpu.vector_store %arg4[%c0_46, %c0_47, %c0_48], %349 {strides = array<i32>} : memref<1x4x256xf32, #tpu.memory_space<vmem>>, vector<1x4x256xf32>,
    return
  }
  func.func @transform_0(%arg0: i32) -> i32 {
    %c0_i32 = arith.constant 0 : i32
    %c0_i32_0 = arith.constant 0 : i32
    return %c0_i32 : i32
  }
  func.func @transform_1(%arg0: i32) -> i32 {
    %c0_i32 = arith.constant 0 : i32
    %c0_i32_0 = arith.constant 0 : i32
    return %c0_i32 : i32
  }
  func.func @transform_2(%arg0: i32) -> (i32, i32, i32) {
    %c0_i32 = arith.constant 0 : i32
    %c0_i32_0 = arith.constant 0 : i32
    %c0_i32_1 = arith.constant 0 : i32
    return %arg0, %c0_i32, %c0_i32_0 : i32, i32, i32
  }
  func.func @transform_3(%arg0: i32) -> (i32, i32, i32) {
    %c0_i32 = arith.constant 0 : i32
    %c0_i32_0 = arith.constant 0 : i32
    %c0_i32_1 = arith.constant 0 : i32
    return %arg0, %c0_i32, %c0_i32_0 : i32, i32, i32
  }
}

</mosaic_0001>

<llo_original>
// kernel: tpu_custom_call.1
$region0: #{tpu_custom_call.1}
  #allocation0 [shape = 'u32[]', space=smem, size = 0x4, offset = 0x4, fixed_abs, tag = 'smem constant byte address 0x4 - core index']
  #allocation1 [shape = 'u32[144,128]{1,0:T(1,128)}', space=vmem, size = 0x12000, scoped, tag = 'internal scratch']
  #allocation2 [shape = 'f32[1,256]{1,0:T(1,128)}', space=vmem, size = 0x400, scoped, tag = 'scratch operand']
  %s0 = inlined_call_operand.hbm [shape: f32[49], index: 0, kind: input, shape index: {}]
  %s1 = inlined_call_operand.vmem [shape: f32[2], index: 1, kind: input, shape index: {}]
  %s2 = inlined_call_operand.hbm [shape: f32[2,4,256], index: 2, kind: input, shape index: {}]
  %s3 = inlined_call_operand.hbm [shape: f32[2,4,256], index: 3, kind: output, shape index: {}]
  %s4 = sld [smem:[#allocation0]]
  $region57: #{tpu_custom_call.1} parent=0
    _
  %s6 = ssub.s32 1, %s4
  %s7 = scalar_select 0, %s6, %s4
  $region1: #{tpu_custom_call.1} parent=0
    #allocation3 [shape = 'u8[512]{0}', space=smem, size = 0x200, scoped, tag = 'input window, operand 0, single buffered']
    #allocation4 [shape = 's32[2]{0}', space=sflag, size = 0x8, scoped, tag = 'scoped memory for tpu_custom_call.1']
    #allocation5 [shape = 's32[2]{0}', space=sflag, size = 0x8, scoped, tag = 'scoped memory for tpu_custom_call.1']
    #allocation6 [shape = 's32[2]{0}', space=sflag, size = 0x8, scoped, tag = 'scoped memory for tpu_custom_call.1']
    #allocation7 [shape = 's32[2]{0}', space=sflag, size = 0x8, scoped, tag = 'scoped memory for tpu_custom_call.1']
    #allocation8 [shape = 'u8[512]{0}', space=smem, size = 0x200, scoped, tag = 'input window, operand 1, single buffered']
    #allocation9 [shape = 'u8[8192]{0}', space=vmem, size = 0x2000, scoped, tag = 'input window, operand 2']
    #allocation10 [shape = 'u8[8192]{0}', space=vmem, size = 0x2000, scoped, tag = 'output window, operand 0']
    %8 = vsyncpa [#allocation6], 0
    %9 = vsyncpa [#allocation7], 0
    %10 = vsyncpa [#allocation4], 0
    %s11 = scalar_lea.sflag [#allocation4], 1
    %12 = vsyncpa %s11, 0
    %13 = vsyncpa [#allocation5], 0
    %s14 = scalar_lea.sflag [#allocation5], 1
    %15 = vsyncpa %s14, 0
    loop: start=0, step=1, limit=4
    $region2: #{tpu_custom_call.1} parent=1 // loop_pre_header
      _
    $region3: #{tpu_custom_call.1} parent=1 // loop_header
      %s17 = sphi 0, %s21
      %p18 = scmp.ge.s32.totalorder %s17, 4
      %s25 = sphi 0, %s25
      %s27 = sphi 0, %s25
      %s28 = sphi 0, %s27
      %s42 = sphi 0, %s28
      %s46 = sphi 0, %s46
      %s48 = sphi 0, %s46
      %s49 = sphi 0, %s48
      %s63 = sphi 0, %s49
      %s69 = sphi 0, %s71
      %s72 = sphi 0, %s69
      %s73 = sphi 0, %s72
      %s89 = sphi 0, %s73
      %s95 = sphi 0, %s97
      %s98 = sphi 0, %s95
      %s99 = sphi 0, %s98
      %s115 = sphi 0, %s99
    $region4: #{tpu_custom_call.1} parent=1 // loop_header_branch
      %20 = sbr.rel (%p18) target = $region8
    $region5: #{tpu_custom_call.1} parent=1 // loop_body
      %s22 = ssub.s32 %s17, 1
      %s23 = ssub.s32 %s17, 2
      %s24 = sadd.s32 %s17, 1
      %s26 = sadd.s32 %s25, 1
      %p29 = scmp.eq.s32.totalorder %s17, 1
      %p30 = scmp.ne.s32.totalorder %s25, %s27
      %p31 = scmp.eq.s32.totalorder %s17, 0
      %p32 = por %p30, %p31
      %p33 = scmp.ne.s32.totalorder %s25, %s27
      %p34 = scmp.eq.s32.totalorder %s22, 1
      %p35 = por %p33, %p34
      %p36 = scmp.ne.s32.totalorder %s27, %s28
      %p37 = scmp.eq.s32.totalorder %s22, 0
      %p38 = por %p36, %p37
      %p39 = scmp.ne.s32.totalorder %s27, %s28
      %p40 = scmp.eq.s32.totalorder %s23, 1
      %p41 = por %p39, %p40
      %p43 = scmp.ne.s32.totalorder %s28, %s42
      %p44 = scmp.eq.s32.totalorder %s23, 0
      %p45 = por %p43, %p44
      %s47 = sadd.s32 %s46, 1
      %p50 = scmp.eq.s32.totalorder %s17, 1
      %p51 = scmp.ne.s32.totalorder %s46, %s48
      %p52 = scmp.eq.s32.totalorder %s17, 0
      %p53 = por %p51, %p52
      %p54 = scmp.ne.s32.totalorder %s46, %s48
      %p55 = scmp.eq.s32.totalorder %s22, 1
      %p56 = por %p54, %p55
      %p57 = scmp.ne.s32.totalorder %s48, %s49
      %p58 = scmp.eq.s32.totalorder %s22, 0
      %p59 = por %p57, %p58
      %p60 = scmp.ne.s32.totalorder %s48, %s49
      %p61 = scmp.eq.s32.totalorder %s23, 1
      %p62 = por %p60, %p61
      %p64 = scmp.ne.s32.totalorder %s49, %s63
      %p65 = scmp.eq.s32.totalorder %s23, 0
      %p66 = por %p64, %p65
      %s67 = ssub.s32 %s17, %s24
      %p68 = scmp.eq.s32.totalorder %s67, 0
      %s70 = sadd.s32 %s69, 1
      %s71 = scalar_select %p68, %s69, %s70
      %p74 = pneg %p68
      %p75 = scmp.eq.s32.totalorder %s17, 1
      %p76 = por %p74, %p75
      %p77 = scmp.ne.s32.totalorder %s69, %s72
      %p78 = scmp.eq.s32.totalorder %s17, 0
      %p79 = por %p77, %p78
      %p80 = scmp.ne.s32.totalorder %s69, %s72
      %p81 = scmp.eq.s32.totalorder %s22, 1
      %p82 = por %p80, %p81
      %p83 = scmp.ne.s32.totalorder %s72, %s73
      %p84 = scmp.eq.s32.totalorder %s22, 0
      %p85 = por %p83, %p84
      %p86 = scmp.ne.s32.totalorder %s72, %s73
      %p87 = scmp.eq.s32.totalorder %s23, 1
      %p88 = por %p86, %p87
      %p90 = scmp.ne.s32.totalorder %s73, %s89
      %p91 = scmp.eq.s32.totalorder %s23, 0
      %p92 = por %p90, %p91
      %s93 = ssub.s32 %s17, %s24
      %p94 = scmp.eq.s32.totalorder %s93, 0
      %s96 = sadd.s32 %s95, 1
      %s97 = scalar_select %p94, %s95, %s96
      %p100 = pneg %p94
      %p101 = scmp.eq.s32.totalorder %s17, 1
      %p102 = por %p100, %p101
      %p103 = scmp.ne.s32.totalorder %s95, %s98
      %p104 = scmp.eq.s32.totalorder %s17, 0
      %p105 = por %p103, %p104
      %p106 = scmp.ne.s32.totalorder %s95, %s98
      %p107 = scmp.eq.s32.totalorder %s22, 1
      %p108 = por %p106, %p107
      %p109 = scmp.ne.s32.totalorder %s98, %s99
      %p110 = scmp.eq.s32.totalorder %s22, 0
      %p111 = por %p109, %p110
      %p112 = scmp.ne.s32.totalorder %s98, %s99
      %p113 = scmp.eq.s32.totalorder %s23, 1
      %p114 = por %p112, %p113
      %p116 = scmp.ne.s32.totalorder %s99, %s115
      %p117 = scmp.eq.s32.totalorder %s23, 0
      %p118 = por %p116, %p117
      %p119 = scmp.le.s32.totalorder 1, %s17
      %p120 = scmp.lt.s32.totalorder %s17, 3
      %p121 = pnand %p119, %p120
      %p122 = pneg %p121
      // Predicated region
      $region9: #{tpu_custom_call.1} parent=5 // pred_check
        _
      $region10: #{tpu_custom_call.1} parent=5 // pred_check_branch
        %124 = sbr.rel (%p121) target = $region12
      $region11: #{tpu_custom_call.1} parent=5 // pred_region
        %s125 = ssub.s32 %s17, 1
        // Predicated region
        $region13: #{tpu_custom_call.1} parent=11 // pred_check
          %p126 = pneg %p38
        $region14: #{tpu_custom_call.1} parent=11 // pred_check_branch
          %128 = sbr.rel (%p126) target = $region16
        $region15: #{tpu_custom_call.1} parent=11 // pred_region
          %s130 = ssub.s32 16, 16
          %131 = vsyncadd [#allocation6], %s130
          %134 = dma.hbm_to_smem %s0, 16, [#allocation3], [#allocation6]
        $region16: #{tpu_custom_call.1} parent=11 // pred_fallthru
          _
        // Predicated region
        $region17: #{tpu_custom_call.1} parent=11 // pred_check
          %p135 = pneg %p59
        $region18: #{tpu_custom_call.1} parent=11 // pred_check_branch
          %137 = sbr.rel (%p135) target = $region20
        $region19: #{tpu_custom_call.1} parent=11 // pred_region
          %s139 = ssub.s32 16, 16
          %140 = vsyncadd [#allocation7], %s139
          %s142 = sshll.u32 %s1, 4
          %s143 = int_to_ptr.vmem [resolvable:$true] %s142
          %145 = dma.vmem_to_smem %s143, 16, [#allocation8], [#allocation7]
        $region20: #{tpu_custom_call.1} parent=11 // pred_fallthru
          _
      $region12: #{tpu_custom_call.1} parent=5 // pred_fallthru
        _
      %p146 = scmp.lt.s32.totalorder %s17, 2
      // Predicated region
      $region21: #{tpu_custom_call.1} parent=5 // pred_check
        %p147 = pneg %p146
      $region22: #{tpu_custom_call.1} parent=5 // pred_check_branch
        %149 = sbr.rel (%p147) target = $region24
      $region23: #{tpu_custom_call.1} parent=5 // pred_region
        // Predicated region
        $region25: #{tpu_custom_call.1} parent=23 // pred_check
          %p150 = pneg %p79
        $region26: #{tpu_custom_call.1} parent=23 // pred_check_branch
          %152 = sbr.rel (%p150) target = $region28
        $region27: #{tpu_custom_call.1} parent=23 // pred_region
          %s153 = sand.u32 %s69, 1
          %s154 = scalar_lea.sflag [#allocation4], %s153
          %s155 = sand.u32 %s69, 1
          %s156 = smul.addr %s155, 8
          %s157 = scalar_lea.vmem [#allocation9], %s156
          %s159 = ssub.s32 128, 128
          %160 = vsyncadd %s154, %s159
          %s161 = smul.addr %s17, 2
          %s162 = smul.addr %s161, 64
          %s163 = scalar_lea.hbm %s2, %s162
          %s165 = sshll.u32 %s157, 4
          %s166 = int_to_ptr.vmem [resolvable:$true] %s165
          %168 = dma.hbm_to_vmem [thread:$0]  %s163, 128, %s166, %s154
        $region28: #{tpu_custom_call.1} parent=23 // pred_fallthru
          _
      $region24: #{tpu_custom_call.1} parent=5 // pred_fallthru
        _
      %p169 = scmp.le.s32.totalorder 1, %s17
      %p170 = scmp.lt.s32.totalorder %s17, 3
      %p171 = pnand %p169, %p170
      %p172 = pneg %p171
      // Predicated region
      $region29: #{tpu_custom_call.1} parent=5 // pred_check
        _
      $region30: #{tpu_custom_call.1} parent=5 // pred_check_branch
        %174 = sbr.rel (%p171) target = $region32
      $region31: #{tpu_custom_call.1} parent=5 // pred_region
        %s175 = ssub.s32 %s17, 1
        // Predicated region
        $region33: #{tpu_custom_call.1} parent=31 // pred_check
          %p176 = pneg %p38
        $region34: #{tpu_custom_call.1} parent=31 // pred_check_branch
          %178 = sbr.rel (%p176) target = $region36
        $region35: #{tpu_custom_call.1} parent=31 // pred_region
          %179 = dma.done [#allocation6], 16
        $region36: #{tpu_custom_call.1} parent=31 // pred_fallthru
          _
        // Predicated region
        $region37: #{tpu_custom_call.1} parent=31 // pred_check
          %p180 = pneg %p59
        $region38: #{tpu_custom_call.1} parent=31 // pred_check_branch
          %182 = sbr.rel (%p180) target = $region40
        $region39: #{tpu_custom_call.1} parent=31 // pred_region
          %183 = dma.done [#allocation7], 16
        $region40: #{tpu_custom_call.1} parent=31 // pred_fallthru
          _
        %s184 = sand.u32 %s72, 1
        %s185 = scalar_lea.sflag [#allocation4], %s184
        %s186 = sand.u32 %s72, 1
        %s187 = smul.addr %s186, 8
        %s188 = scalar_lea.vmem [#allocation9], %s187
        // Predicated region
        $region41: #{tpu_custom_call.1} parent=31 // pred_check
          %p189 = pneg %p85
        $region42: #{tpu_custom_call.1} parent=31 // pred_check_branch
          %191 = sbr.rel (%p189) target = $region44
        $region43: #{tpu_custom_call.1} parent=31 // pred_region
          %192 = dma.done %s185, 128
        $region44: #{tpu_custom_call.1} parent=31 // pred_fallthru
          _
        %193 = sfence
        %p194 = pneg %p38
        %p195 = pneg %p35
        %p196 = pneg %p59
        %p197 = pneg %p56
        %s198 = sand.u32 %s72, 1
        %s199 = scalar_lea.sflag [#allocation4], %s198
        %s200 = sand.u32 %s72, 1
        %s201 = smul.addr %s200, 8
        %s202 = scalar_lea.vmem [#allocation9], %s201
        %p203 = pneg %p85
        %p204 = pneg %p82
        %p205 = pneg %p111
        %p206 = pneg %p108
        %s207 = sand.u32 %s98, 1
        %s208 = scalar_lea.sflag [#allocation5], %s207
        %s209 = sand.u32 %s98, 1
        %s210 = smul.addr %s209, 8
        %s211 = scalar_lea.vmem [#allocation10], %s210
        %v212 = vld [vmem:[%s188] sm:$0xff]
        %v214 = vcombine.high %v212, %v212
        %vm216 = vcmask 1043456
        %v217 = vsel %vm216, %v212, 0.0
        %v218 = vrot.slane %v217, 4
        %v219 = vadd.f32 %v217, %v218
        %v220 = vrot.slane %v219, 2
        %v221 = vadd.f32 %v219, %v220
        %v222 = vrot.slane %v221, 1
        %v223 = vadd.f32 %v221, %v222
        %v224 = vsel %vm216, %v214, 0.0
        %v225 = vrot.slane %v224, 4
        %v226 = vadd.f32 %v224, %v225
        %v227 = vrot.slane %v226, 2
        %v228 = vadd.f32 %v226, %v227
        %v229 = vrot.slane %v228, 1
        %v230 = vadd.f32 %v228, %v229
        %v233 = vcombine.low %v223, %v230
        %v235 = vunpack.c.l.s4 1966171168
        %v236 = vunpack.c.0.s8 %v235
        %v237 = vlaneseq
        %v238 = vshrl.u32 %v237, 7
        %v239 = vsub.s32 %v236, %v238
        %v240 = vrot.slane %v233, %v239
        %v242 = vunpack.c.l.s4 1966171168
        %v243 = vunpack.c.0.s8 %v242
        %v244 = vlaneseq
        %v245 = vshrl.u32 %v244, 7
        %v246 = vsub.s32 %v243, %v245
        %v247 = vrot.slane %v240, %v246
        %v249 = vlaneseq
        %vm250 = vcmp.ge.s32.totalorder %v249, 0
        %vm251 = vcmp.lt.s32.totalorder %v249, 256
        %vm252 = vmand %vm250, %vm251
        %253 = vst.msk [vmem:[#allocation2] sm:$0x3] %vm252, %v247
        %v254 = vld [vmem:[#allocation2] sm:$0x3]
        %v255 = vmul.f32 %v254, 0.25
        %v256 = vlaneseq
        %v257 = vand.u32 %v256, 127
        %v258 = vadd.s32 %v257, 128
        %vm259 = vcmp.lt.s32.totalorder %v257, 0
        %v260 = vsub.s32 0, %v257
        %v261 = vsel %vm259, %v260, %v257
        %v262 = vshrl.u32 %v261, 4
        %v263 = vand.u32 %v261, 15
        %v264 = vsub.s32 0, %v263
        %v265 = vsel %vm259, %v264, %v263
        %vm266 = vcmp.lt.s32.totalorder %v258, 0
        %v267 = vsub.s32 0, %v258
        %v268 = vsel %vm266, %v267, %v258
        %v269 = vshrl.u32 %v268, 4
        %v270 = vand.u32 %v268, 15
        %v271 = vsub.s32 0, %v270
        %v272 = vsel %vm266, %v271, %v270
        %vm273 = vcmp.ne.s32.totalorder %v265, 0
        %vm274 = vcmp.ne.s32.totalorder %v272, 0
        %vm275 = vcmp.lt.s32.totalorder %v265, 0
        %vm276 = vcmp.lt.s32.totalorder %v272, 0
        %vm277 = vmand %vm275, %vm273
        %vm278 = vmand %vm276, %vm274
        %v279 = vadd.s32 %v265, 16
        %v280 = vadd.s32 %v272, 16
        %v281 = vsel %vm277, %v279, %v265
        %v282 = vsel %vm278, %v280, %v272
        %v284 = vlaneseq
        %v285 = vshrl.u32 %v284, 7
        %v286 = vsub.s32 0, %v285
        %v287 = vrot.slane %v255, %v286
        %v288 = vlaneseq
        %v289 = vshrl.u32 %v288, 7
        %v290 = vsub.s32 1, %v289
        %v291 = vrot.slane %v255, %v290
        %294 = vrot.lane.b32.xlu0 %v287, 48
        %v295 = vpop.permute.xlu0 %294
        %296 = vrot.lane.b32.xlu0 %v291, 48
        %v297 = vpop.permute.xlu0 %296
        %vm298 = vcmp.lt.s32.totalorder %v257, 48
        %v299 = vsel %vm298, %v295, %v297
        %v300 = vsel %vm298, %v297, %v295
        %vm301 = vcmp.ge.s32.totalorder %v257, 48
        %vm302 = vcmp.ge.s32.totalorder %v258, 48
        %vm303 = vcmp.lt.s32.totalorder %v257, 304
        %vm304 = vcmp.lt.s32.totalorder %v258, 304
        %vm305 = vmand %vm301, %vm303
        %vm306 = vmand %vm302, %vm304
        %v307 = vsel %vm305, %v300, 0.0
        %v308 = vsel %vm306, %v299, 0.0
        %309 = vrot.lane.b32.xlu0 %v287, 32
        %v310 = vpop.permute.xlu0 %309
        %311 = vrot.lane.b32.xlu0 %v291, 32
        %v312 = vpop.permute.xlu0 %311
        %vm313 = vcmp.lt.s32.totalorder %v257, 32
        %v314 = vsel %vm313, %v310, %v312
        %v315 = vsel %vm313, %v312, %v310
        %vm316 = vcmp.ge.s32.totalorder %v257, 32
        %vm317 = vcmp.ge.s32.totalorder %v258, 32
        %vm318 = vcmp.lt.s32.totalorder %v257, 288
        %vm319 = vcmp.lt.s32.totalorder %v258, 288
        %vm320 = vmand %vm316, %vm318
        %vm321 = vmand %vm317, %vm319
        %v322 = vsel %vm320, %v315, 0.0
        %v323 = vsel %vm321, %v314, 0.0
        %324 = vrot.lane.b32.xlu0 %v287, 16
        %v325 = vpop.permute.xlu0 %324
        %326 = vrot.lane.b32.xlu0 %v291, 16
        %v327 = vpop.permute.xlu0 %326
        %vm328 = vcmp.lt.s32.totalorder %v257, 16
        %v329 = vsel %vm328, %v325, %v327
        %v330 = vsel %vm328, %v327, %v325
        %vm331 = vcmp.ge.s32.totalorder %v257, 16
        %vm332 = vcmp.ge.s32.totalorder %v258, 16
        %vm333 = vcmp.lt.s32.totalorder %v257, 272
        %vm334 = vcmp.lt.s32.totalorder %v258, 272
        %vm335 = vmand %vm331, %vm333
        %vm336 = vmand %vm332, %vm334
        %v337 = vsel %vm335, %v330, 0.0
        %v338 = vsel %vm336, %v329, 0.0
        %vm339 = vcmp.ge.s32.totalorder %v257, 0
        %vm340 = vcmp.ge.s32.totalorder %v258, 0
        %vm341 = vcmp.lt.s32.totalorder %v257, 256
        %vm342 = vcmp.lt.s32.totalorder %v258, 256
        %vm343 = vmand %vm339, %vm341
        %vm344 = vmand %vm340, %vm342
        %v345 = vsel %vm343, %v287, 0.0
        %v346 = vsel %vm344, %v291, 0.0
        %347 = vrot.lane.b32.xlu0 %v287, 112
        %v348 = vpop.permute.xlu0 %347
        %349 = vrot.lane.b32.xlu0 %v291, 112
        %v350 = vpop.permute.xlu0 %349
        %vm351 = vcmp.lt.s32.totalorder %v257, 112
        %v352 = vsel %vm351, %v348, %v350
        %v353 = vsel %vm351, %v350, %v348
        %vm354 = vcmp.ge.s32.totalorder %v257, 4294967280
        %vm355 = vcmp.ge.s32.totalorder %v258, 4294967280
        %vm356 = vcmp.lt.s32.totalorder %v257, 240
        %vm357 = vcmp.lt.s32.totalorder %v258, 240
        %vm358 = vmand %vm354, %vm356
        %vm359 = vmand %vm355, %vm357
        %v360 = vsel %vm358, %v352, 0.0
        %v361 = vsel %vm359, %v353, 0.0
        %362 = vrot.lane.b32.xlu0 %v287, 96
        %v363 = vpop.permute.xlu0 %362
        %364 = vrot.lane.b32.xlu0 %v291, 96
        %v365 = vpop.permute.xlu0 %364
        %vm366 = vcmp.lt.s32.totalorder %v257, 96
        %v367 = vsel %vm366, %v363, %v365
        %v368 = vsel %vm366, %v365, %v363
        %vm369 = vcmp.ge.s32.totalorder %v257, 4294967264
        %vm370 = vcmp.ge.s32.totalorder %v258, 4294967264
        %vm371 = vcmp.lt.s32.totalorder %v257, 224
        %vm372 = vcmp.lt.s32.totalorder %v258, 224
        %vm373 = vmand %vm369, %vm371
        %vm374 = vmand %vm370, %vm372
        %v375 = vsel %vm373, %v367, 0.0
        %v376 = vsel %vm374, %v368, 0.0
        %377 = vrot.lane.b32.xlu0 %v287, 80
        %v378 = vpop.permute.xlu0 %377
        %379 = vrot.lane.b32.xlu0 %v291, 80
        %v380 = vpop.permute.xlu0 %379
        %vm381 = vcmp.lt.s32.totalorder %v257, 80
        %v382 = vsel %vm381, %v378, %v380
        %v383 = vsel %vm381, %v380, %v378
        %vm384 = vcmp.ge.s32.totalorder %v257, 4294967248
        %vm385 = vcmp.ge.s32.totalorder %v258, 4294967248
        %vm386 = vcmp.lt.s32.totalorder %v257, 208
        %vm387 = vcmp.lt.s32.totalorder %v258, 208
        %vm388 = vmand %vm384, %vm386
        %vm389 = vmand %vm385, %vm387
        %v390 = vsel %vm388, %v382, 0.0
        %v391 = vsel %vm389, %v383, 0.0
        %s392 = sld [smem:[#allocation3]]
        %v393 = vstv %s392
        %v394 = vmul.f32 %v307, %v393
        %v395 = vmul.f32 %v308, %v393
        %s396 = sld [smem:[#allocation3 + $0x7]]
        %v397 = vstv %s396
        %v398 = vmul.f32 %v322, %v397
        %v399 = vmul.f32 %v323, %v397
        %v400 = vadd.f32 %v394, %v398
        %v401 = vadd.f32 %v395, %v399
        %s402 = sld [smem:[#allocation3 + $0xe]]
        %v403 = vstv %s402
        %v404 = vmul.f32 %v337, %v403
        %v405 = vmul.f32 %v338, %v403
        %v406 = vadd.f32 %v400, %v404
        %v407 = vadd.f32 %v401, %v405
        %s408 = sld [smem:[#allocation3 + $0x15]]
        %v409 = vstv %s408
        %v410 = vmul.f32 %v345, %v409
        %v411 = vmul.f32 %v346, %v409
        %v412 = vadd.f32 %v406, %v410
        %v413 = vadd.f32 %v407, %v411
        %s414 = sld [smem:[#allocation3 + $0x1c]]
        %v415 = vstv %s414
        %v416 = vmul.f32 %v360, %v415
        %v417 = vmul.f32 %v361, %v415
        %v418 = vadd.f32 %v412, %v416
        %v419 = vadd.f32 %v413, %v417
        %s420 = sld [smem:[#allocation3 + $0x23]]
        %v421 = vstv %s420
        %v422 = vmul.f32 %v375, %v421
        %v423 = vmul.f32 %v376, %v421
        %v424 = vadd.f32 %v418, %v422
        %v425 = vadd.f32 %v419, %v423
        %s426 = sld [smem:[#allocation3 + $0x2a]]
        %v427 = vstv %s426
        %v428 = vmul.f32 %v390, %v427
        %v429 = vmul.f32 %v391, %v427
        %v430 = vadd.f32 %v424, %v428
        %v431 = vadd.f32 %v425, %v429
        %432 = vrot.lane.b32.xlu0 %v430, 3
        %v433 = vpop.permute.xlu0 %432
        %434 = vrot.lane.b32.xlu0 %v431, 3
        %v435 = vpop.permute.xlu0 %434
        %vm436 = vcmp.lt.s32.totalorder %v257, 3
        %v437 = vsel %vm436, %v433, %v435
        %v438 = vsel %vm436, %v435, %v433
        %vm439 = vcmp.ge.s32.totalorder %v281, 3
        %vm440 = vcmp.ge.s32.totalorder %v282, 3
        %vm441 = vcmp.lt.s32.totalorder %v281, 19
        %vm442 = vcmp.lt.s32.totalorder %v282, 19
        %vm443 = vmand %vm439, %vm441
        %vm444 = vmand %vm440, %vm442
        %v445 = vsel %vm443, %v438, 0.0
        %v446 = vsel %vm444, %v437, 0.0
        %v447 = vadd.f32 %v445, 0.0
        %v448 = vadd.f32 %v446, 0.0
        %s449 = sld [smem:[#allocation3 + $0x1]]
        %v450 = vstv %s449
        %v451 = vmul.f32 %v307, %v450
        %v452 = vmul.f32 %v308, %v450
        %s453 = sld [smem:[#allocation3 + $0x8]]
        %v454 = vstv %s453
        %v455 = vmul.f32 %v322, %v454
        %v456 = vmul.f32 %v323, %v454
        %v457 = vadd.f32 %v451, %v455
        %v458 = vadd.f32 %v452, %v456
        %s459 = sld [smem:[#allocation3 + $0xf]]
        %v460 = vstv %s459
        %v461 = vmul.f32 %v337, %v460
        %v462 = vmul.f32 %v338, %v460
        %v463 = vadd.f32 %v457, %v461
        %v464 = vadd.f32 %v458, %v462
        %s465 = sld [smem:[#allocation3 + $0x16]]
        %v466 = vstv %s465
        %v467 = vmul.f32 %v345, %v466
        %v468 = vmul.f32 %v346, %v466
        %v469 = vadd.f32 %v463, %v467
        %v470 = vadd.f32 %v464, %v468
        %s471 = sld [smem:[#allocation3 + $0x1d]]
        %v472 = vstv %s471
        %v473 = vmul.f32 %v360, %v472
        %v474 = vmul.f32 %v361, %v472
        %v475 = vadd.f32 %v469, %v473
        %v476 = vadd.f32 %v470, %v474
        %s477 = sld [smem:[#allocation3 + $0x24]]
        %v478 = vstv %s477
        %v479 = vmul.f32 %v375, %v478
        %v480 = vmul.f32 %v376, %v478
        %v481 = vadd.f32 %v475, %v479
        %v482 = vadd.f32 %v476, %v480
        %s483 = sld [smem:[#allocation3 + $0x2b]]
        %v484 = vstv %s483
        %v485 = vmul.f32 %v390, %v484
        %v486 = vmul.f32 %v391, %v484
        %v487 = vadd.f32 %v481, %v485
        %v488 = vadd.f32 %v482, %v486
        %489 = vrot.lane.b32.xlu0 %v487, 2
        %v490 = vpop.permute.xlu0 %489
        %491 = vrot.lane.b32.xlu0 %v488, 2
        %v492 = vpop.permute.xlu0 %491
        %vm493 = vcmp.lt.s32.totalorder %v257, 2
        %v494 = vsel %vm493, %v490, %v492
        %v495 = vsel %vm493, %v492, %v490
        %vm496 = vcmp.ge.s32.totalorder %v281, 2
        %vm497 = vcmp.ge.s32.totalorder %v282, 2
        %vm498 = vcmp.lt.s32.totalorder %v281, 18
        %vm499 = vcmp.lt.s32.totalorder %v282, 18
        %vm500 = vmand %vm496, %vm498
        %vm501 = vmand %vm497, %vm499
        %v502 = vsel %vm500, %v495, 0.0
        %v503 = vsel %vm501, %v494, 0.0
        %v504 = vadd.f32 %v447, %v502
        %v505 = vadd.f32 %v448, %v503
        %s506 = sld [smem:[#allocation3 + $0x2]]
        %v507 = vstv %s506
        %v508 = vmul.f32 %v307, %v507
        %v509 = vmul.f32 %v308, %v507
        %s510 = sld [smem:[#allocation3 + $0x9]]
        %v511 = vstv %s510
        %v512 = vmul.f32 %v322, %v511
        %v513 = vmul.f32 %v323, %v511
        %v514 = vadd.f32 %v508, %v512
        %v515 = vadd.f32 %v509, %v513
        %s516 = sld [smem:[#allocation3 + $0x10]]
        %v517 = vstv %s516
        %v518 = vmul.f32 %v337, %v517
        %v519 = vmul.f32 %v338, %v517
        %v520 = vadd.f32 %v514, %v518
        %v521 = vadd.f32 %v515, %v519
        %s522 = sld [smem:[#allocation3 + $0x17]]
        %v523 = vstv %s522
        %v524 = vmul.f32 %v345, %v523
        %v525 = vmul.f32 %v346, %v523
        %v526 = vadd.f32 %v520, %v524
        %v527 = vadd.f32 %v521, %v525
        %s528 = sld [smem:[#allocation3 + $0x1e]]
        %v529 = vstv %s528
        %v530 = vmul.f32 %v360, %v529
        %v531 = vmul.f32 %v361, %v529
        %v532 = vadd.f32 %v526, %v530
        %v533 = vadd.f32 %v527, %v531
        %s534 = sld [smem:[#allocation3 + $0x25]]
        %v535 = vstv %s534
        %v536 = vmul.f32 %v375, %v535
        %v537 = vmul.f32 %v376, %v535
        %v538 = vadd.f32 %v532, %v536
        %v539 = vadd.f32 %v533, %v537
        %s540 = sld [smem:[#allocation3 + $0x2c]]
        %v541 = vstv %s540
        %v542 = vmul.f32 %v390, %v541
        %v543 = vmul.f32 %v391, %v541
        %v544 = vadd.f32 %v538, %v542
        %v545 = vadd.f32 %v539, %v543
        %546 = vrot.lane.b32.xlu0 %v544, 1
        %v547 = vpop.permute.xlu0 %546
        %548 = vrot.lane.b32.xlu0 %v545, 1
        %v549 = vpop.permute.xlu0 %548
        %vm550 = vcmp.lt.s32.totalorder %v257, 1
        %v551 = vsel %vm550, %v547, %v549
        %v552 = vsel %vm550, %v549, %v547
        %vm553 = vcmp.ge.s32.totalorder %v281, 1
        %vm554 = vcmp.ge.s32.totalorder %v282, 1
        %vm555 = vcmp.lt.s32.totalorder %v281, 17
        %vm556 = vcmp.lt.s32.totalorder %v282, 17
        %vm557 = vmand %vm553, %vm555
        %vm558 = vmand %vm554, %vm556
        %v559 = vsel %vm557, %v552, 0.0
        %v560 = vsel %vm558, %v551, 0.0
        %v561 = vadd.f32 %v504, %v559
        %v562 = vadd.f32 %v505, %v560
        %s563 = sld [smem:[#allocation3 + $0x3]]
        %v564 = vstv %s563
        %v565 = vmul.f32 %v307, %v564
        %v566 = vmul.f32 %v308, %v564
        %s567 = sld [smem:[#allocation3 + $0xa]]
        %v568 = vstv %s567
        %v569 = vmul.f32 %v322, %v568
        %v570 = vmul.f32 %v323, %v568
        %v571 = vadd.f32 %v565, %v569
        %v572 = vadd.f32 %v566, %v570
        %s573 = sld [smem:[#allocation3 + $0x11]]
        %v574 = vstv %s573
        %v575 = vmul.f32 %v337, %v574
        %v576 = vmul.f32 %v338, %v574
        %v577 = vadd.f32 %v571, %v575
        %v578 = vadd.f32 %v572, %v576
        %s579 = sld [smem:[#allocation3 + $0x18]]
        %v580 = vstv %s579
        %v581 = vmul.f32 %v345, %v580
        %v582 = vmul.f32 %v346, %v580
        %v583 = vadd.f32 %v577, %v581
        %v584 = vadd.f32 %v578, %v582
        %s585 = sld [smem:[#allocation3 + $0x1f]]
        %v586 = vstv %s585
        %v587 = vmul.f32 %v360, %v586
        %v588 = vmul.f32 %v361, %v586
        %v589 = vadd.f32 %v583, %v587
        %v590 = vadd.f32 %v584, %v588
        %s591 = sld [smem:[#allocation3 + $0x26]]
        %v592 = vstv %s591
        %v593 = vmul.f32 %v375, %v592
        %v594 = vmul.f32 %v376, %v592
        %v595 = vadd.f32 %v589, %v593
        %v596 = vadd.f32 %v590, %v594
        %s597 = sld [smem:[#allocation3 + $0x2d]]
        %v598 = vstv %s597
        %v599 = vmul.f32 %v390, %v598
        %v600 = vmul.f32 %v391, %v598
        %v601 = vadd.f32 %v595, %v599
        %v602 = vadd.f32 %v596, %v600
        %vm603 = vcmp.ge.s32.totalorder %v281, 0
        %vm604 = vcmp.ge.s32.totalorder %v282, 0
        %vm605 = vcmp.lt.s32.totalorder %v281, 16
        %vm606 = vcmp.lt.s32.totalorder %v282, 16
        %vm607 = vmand %vm603, %vm605
        %vm608 = vmand %vm604, %vm606
        %v609 = vsel %vm607, %v601, 0.0
        %v610 = vsel %vm608, %v602, 0.0
        %v611 = vadd.f32 %v561, %v609
        %v612 = vadd.f32 %v562, %v610
        %s613 = sld [smem:[#allocation3 + $0x4]]
        %v614 = vstv %s613
        %v615 = vmul.f32 %v307, %v614
        %v616 = vmul.f32 %v308, %v614
        %s617 = sld [smem:[#allocation3 + $0xb]]
        %v618 = vstv %s617
        %v619 = vmul.f32 %v322, %v618
        %v620 = vmul.f32 %v323, %v618
        %v621 = vadd.f32 %v615, %v619
        %v622 = vadd.f32 %v616, %v620
        %s623 = sld [smem:[#allocation3 + $0x12]]
        %v624 = vstv %s623
        %v625 = vmul.f32 %v337, %v624
        %v626 = vmul.f32 %v338, %v624
        %v627 = vadd.f32 %v621, %v625
        %v628 = vadd.f32 %v622, %v626
        %s629 = sld [smem:[#allocation3 + $0x19]]
        %v630 = vstv %s629
        %v631 = vmul.f32 %v345, %v630
        %v632 = vmul.f32 %v346, %v630
        %v633 = vadd.f32 %v627, %v631
        %v634 = vadd.f32 %v628, %v632
        %s635 = sld [smem:[#allocation3 + $0x20]]
        %v636 = vstv %s635
        %v637 = vmul.f32 %v360, %v636
        %v638 = vmul.f32 %v361, %v636
        %v639 = vadd.f32 %v633, %v637
        %v640 = vadd.f32 %v634, %v638
        %s641 = sld [smem:[#allocation3 + $0x27]]
        %v642 = vstv %s641
        %v643 = vmul.f32 %v375, %v642
        %v644 = vmul.f32 %v376, %v642
        %v645 = vadd.f32 %v639, %v643
        %v646 = vadd.f32 %v640, %v644
        %s647 = sld [smem:[#allocation3 + $0x2e]]
        %v648 = vstv %s647
        %v649 = vmul.f32 %v390, %v648
        %v650 = vmul.f32 %v391, %v648
        %v651 = vadd.f32 %v645, %v649
        %v652 = vadd.f32 %v646, %v650
        %653 = vrot.lane.b32.xlu0 %v651, 127
        %v654 = vpop.permute.xlu0 %653
        %655 = vrot.lane.b32.xlu0 %v652, 127
        %v656 = vpop.permute.xlu0 %655
        %vm657 = vcmp.lt.s32.totalorder %v257, 127
        %v658 = vsel %vm657, %v654, %v656
        %v659 = vsel %vm657, %v656, %v654
        %vm660 = vcmp.ge.s32.totalorder %v281, 4294967295
        %vm661 = vcmp.ge.s32.totalorder %v282, 4294967295
        %vm662 = vcmp.lt.s32.totalorder %v281, 15
        %vm663 = vcmp.lt.s32.totalorder %v282, 15
        %vm664 = vmand %vm660, %vm662
        %vm665 = vmand %vm661, %vm663
        %v666 = vsel %vm664, %v658, 0.0
        %v667 = vsel %vm665, %v659, 0.0
        %v668 = vadd.f32 %v611, %v666
        %v669 = vadd.f32 %v612, %v667
        %s670 = sld [smem:[#allocation3 + $0x5]]
        %v671 = vstv %s670
        %v672 = vmul.f32 %v307, %v671
        %v673 = vmul.f32 %v308, %v671
        %s674 = sld [smem:[#allocation3 + $0xc]]
        %v675 = vstv %s674
        %v676 = vmul.f32 %v322, %v675
        %v677 = vmul.f32 %v323, %v675
        %v678 = vadd.f32 %v672, %v676
        %v679 = vadd.f32 %v673, %v677
        %s680 = sld [smem:[#allocation3 + $0x13]]
        %v681 = vstv %s680
        %v682 = vmul.f32 %v337, %v681
        %v683 = vmul.f32 %v338, %v681
        %v684 = vadd.f32 %v678, %v682
        %v685 = vadd.f32 %v679, %v683
        %s686 = sld [smem:[#allocation3 + $0x1a]]
        %v687 = vstv %s686
        %v688 = vmul.f32 %v345, %v687
        %v689 = vmul.f32 %v346, %v687
        %v690 = vadd.f32 %v684, %v688
        %v691 = vadd.f32 %v685, %v689
        %s692 = sld [smem:[#allocation3 + $0x21]]
        %v693 = vstv %s692
        %v694 = vmul.f32 %v360, %v693
        %v695 = vmul.f32 %v361, %v693
        %v696 = vadd.f32 %v690, %v694
        %v697 = vadd.f32 %v691, %v695
        %s698 = sld [smem:[#allocation3 + $0x28]]
        %v699 = vstv %s698
        %v700 = vmul.f32 %v375, %v699
        %v701 = vmul.f32 %v376, %v699
        %v702 = vadd.f32 %v696, %v700
        %v703 = vadd.f32 %v697, %v701
        %s704 = sld [smem:[#allocation3 + $0x2f]]
        %v705 = vstv %s704
        %v706 = vmul.f32 %v390, %v705
        %v707 = vmul.f32 %v391, %v705
        %v708 = vadd.f32 %v702, %v706
        %v709 = vadd.f32 %v703, %v707
        %710 = vrot.lane.b32.xlu0 %v708, 126
        %v711 = vpop.permute.xlu0 %710
        %712 = vrot.lane.b32.xlu0 %v709, 126
        %v713 = vpop.permute.xlu0 %712
        %vm714 = vcmp.lt.s32.totalorder %v257, 126
        %v715 = vsel %vm714, %v711, %v713
        %v716 = vsel %vm714, %v713, %v711
        %vm717 = vcmp.ge.s32.totalorder %v281, 4294967294
        %vm718 = vcmp.ge.s32.totalorder %v282, 4294967294
        %vm719 = vcmp.lt.s32.totalorder %v281, 14
        %vm720 = vcmp.lt.s32.totalorder %v282, 14
        %vm721 = vmand %vm717, %vm719
        %vm722 = vmand %vm718, %vm720
        %v723 = vsel %vm721, %v715, 0.0
        %v724 = vsel %vm722, %v716, 0.0
        %v725 = vadd.f32 %v668, %v723
        %v726 = vadd.f32 %v669, %v724
        %s727 = sld [smem:[#allocation3 + $0x6]]
        %v728 = vstv %s727
        %v729 = vmul.f32 %v307, %v728
        %v730 = vmul.f32 %v308, %v728
        %s731 = sld [smem:[#allocation3 + $0xd]]
        %v732 = vstv %s731
        %v733 = vmul.f32 %v322, %v732
        %v734 = vmul.f32 %v323, %v732
        %v735 = vadd.f32 %v729, %v733
        %v736 = vadd.f32 %v730, %v734
        %s737 = sld [smem:[#allocation3 + $0x14]]
        %v738 = vstv %s737
        %v739 = vmul.f32 %v337, %v738
        %v740 = vmul.f32 %v338, %v738
        %v741 = vadd.f32 %v735, %v739
        %v742 = vadd.f32 %v736, %v740
        %s743 = sld [smem:[#allocation3 + $0x1b]]
        %v744 = vstv %s743
        %v745 = vmul.f32 %v345, %v744
        %v746 = vmul.f32 %v346, %v744
        %v747 = vadd.f32 %v741, %v745
        %v748 = vadd.f32 %v742, %v746
        %s749 = sld [smem:[#allocation3 + $0x22]]
        %v750 = vstv %s749
        %v751 = vmul.f32 %v360, %v750
        %v752 = vmul.f32 %v361, %v750
        %v753 = vadd.f32 %v747, %v751
        %v754 = vadd.f32 %v748, %v752
        %s755 = sld [smem:[#allocation3 + $0x29]]
        %v756 = vstv %s755
        %v757 = vmul.f32 %v375, %v756
        %v758 = vmul.f32 %v376, %v756
        %v759 = vadd.f32 %v753, %v757
        %v760 = vadd.f32 %v754, %v758
        %s761 = sld [smem:[#allocation3 + $0x30]]
        %v762 = vstv %s761
        %v763 = vmul.f32 %v390, %v762
        %v764 = vmul.f32 %v391, %v762
        %v765 = vadd.f32 %v759, %v763
        %v766 = vadd.f32 %v760, %v764
        %767 = vrot.lane.b32.xlu0 %v765, 125
        %v768 = vpop.permute.xlu0 %767
        %769 = vrot.lane.b32.xlu0 %v766, 125
        %v770 = vpop.permute.xlu0 %769
        %vm771 = vcmp.lt.s32.totalorder %v257, 125
        %v772 = vsel %vm771, %v768, %v770
        %v773 = vsel %vm771, %v770, %v768
        %vm774 = vcmp.ge.s32.totalorder %v281, 4294967293
        %vm775 = vcmp.ge.s32.totalorder %v282, 4294967293
        %vm776 = vcmp.lt.s32.totalorder %v281, 13
        %vm777 = vcmp.lt.s32.totalorder %v282, 13
        %vm778 = vmand %vm774, %vm776
        %vm779 = vmand %vm775, %vm777
        %v780 = vsel %vm778, %v772, 0.0
        %v781 = vsel %vm779, %v773, 0.0
        %v782 = vadd.f32 %v725, %v780
        %v783 = vadd.f32 %v726, %v781
        %s784 = sld [smem:[#allocation8]]
        %v785 = vstv %s784
        %v786 = vmul.f32 %v782, %v785
        %v787 = vmul.f32 %v783, %v785
        %s788 = sld [smem:[#allocation8 + $0x1]]
        %v789 = vstv %s788
        %v790 = vadd.f32 %v786, %v789
        %v791 = vadd.f32 %v787, %v789
        %v792 = vxor.u32 %v790, 2147483648
        %v793 = vxor.u32 %v791, 2147483648
        %v794 = vmul.f32 %v792, 1.442695
        %v795 = vpow.pop %v794
        %v796 = vmul.f32 %v793, 1.442695
        %v797 = vpow.pop %v796
        %v798 = vadd.f32 %v795, 1.0
        %v799 = vadd.f32 %v797, 1.0
        %v800 = vrcp.pop %v798
        %v801 = vmul.f32 1.0, %v800
        %v802 = vrcp.pop %v799
        %v803 = vmul.f32 1.0, %v802
        %v804 = vld [vmem:[%s188] sm:$0xff]
        %v805 = vlaneseq
        %v806 = vshrl.u32 %v805, 7
        %v807 = vsub.s32 0, %v806
        %v808 = vrot.slane %v801, %v807
        %v809 = vlaneseq
        %v810 = vshrl.u32 %v809, 7
        %v811 = vsub.s32 0, %v810
        %v812 = vrot.slane %v803, %v811
        %v815 = vcombine.low %v808, %v812
        %v817 = vmul.f32 %v804, %v815
        %818 = vst [vmem:[%s211] sm:$0xff] %v817
        %s819 = sand.u32 %s98, 1
        %s820 = scalar_lea.sflag [#allocation5], %s819
        %s821 = sand.u32 %s98, 1
        %s822 = smul.addr %s821, 8
        %s823 = scalar_lea.vmem [#allocation10], %s822
        // Predicated region
        $region45: #{tpu_custom_call.1} parent=31 // pred_check
          %p824 = pneg %p108
        $region46: #{tpu_custom_call.1} parent=31 // pred_check_branch
          %826 = sbr.rel (%p824) target = $region48
        $region47: #{tpu_custom_call.1} parent=31 // pred_region
          %s828 = ssub.s32 128, 128
          %829 = vsyncadd %s820, %s828
          %s830 = smul.addr %s22, 2
          %s831 = smul.addr %s830, 64
          %s832 = scalar_lea.hbm %s3, %s831
          %s834 = sshll.u32 %s823, 4
          %s835 = int_to_ptr.vmem [resolvable:$true] %s834
          %837 = dma.vmem_to_hbm [thread:$0]  %s835, 128, %s832, %s820
        $region48: #{tpu_custom_call.1} parent=31 // pred_fallthru
          _
      $region32: #{tpu_custom_call.1} parent=5 // pred_fallthru
        _
      %p838 = scmp.le.s32.totalorder 2, %s17
      // Predicated region
      $region49: #{tpu_custom_call.1} parent=5 // pred_check
        %p839 = pneg %p838
      $region50: #{tpu_custom_call.1} parent=5 // pred_check_branch
        %841 = sbr.rel (%p839) target = $region52
      $region51: #{tpu_custom_call.1} parent=5 // pred_region
        %s842 = ssub.s32 %s17, 2
        // Predicated region
        $region53: #{tpu_custom_call.1} parent=51 // pred_check
          %p843 = pneg %p114
        $region54: #{tpu_custom_call.1} parent=51 // pred_check_branch
          %845 = sbr.rel (%p843) target = $region56
        $region55: #{tpu_custom_call.1} parent=51 // pred_region
          %s846 = sand.u32 %s99, 1
          %s847 = scalar_lea.sflag [#allocation5], %s846
          %s848 = sand.u32 %s99, 1
          %s849 = smul.addr %s848, 8
          %s850 = scalar_lea.vmem [#allocation10], %s849
          %851 = dma.done %s847, 128
        $region56: #{tpu_custom_call.1} parent=51 // pred_fallthru
          _
      $region52: #{tpu_custom_call.1} parent=5 // pred_fallthru
        _
    $region6: #{tpu_custom_call.1} parent=1 // loop_footer
      %s21 = sadd.s32 1, %s17
    $region7: #{tpu_custom_call.1} parent=1 // loop_footer_branch
      %16 = sbr.rel target = $region3
    $region8: #{tpu_custom_call.1} parent=1 // loop_exit
      _
    %852 = vsyncpa [#allocation4], 1
    %s853 = scalar_lea.sflag [#allocation4], 1
    %854 = vsyncpa %s853, 1
    %855 = vsyncpa [#allocation5], 1
    %s856 = scalar_lea.sflag [#allocation5], 1
    %857 = vsyncpa %s856, 1
    %858 = vsyncpa [#allocation6], 1
    %s859 = scalar_lea.sflag [#allocation6], 1
    %860 = vsyncpa %s859, 1
    %861 = vsyncpa [#allocation7], 1
    %s862 = scalar_lea.sflag [#allocation7], 1
    %863 = vsyncpa %s862, 1

</llo_original>
